<compile_context>
chip_gen: v6e
topology: v6e:2x2x1
jax: 0.10.0
libtpu: 0.0.40
codegen_flags: <defaults>
</compile_context>

<pallas_src>
import math

import jax
import jax.numpy as jnp
from jax.experimental import pallas as pl
from jax.experimental.pallas import tpu as pltpu


def _round_up(x, m):
    return ((x + m - 1) // m) * m


def _silu(x):
    return x * jax.nn.sigmoid(x)


def _vmem_capacity_bytes():
    """Physical VMEM per TensorCore; conservative fallback if query fails."""
    try:
        return int(pltpu.get_tpu_info().vmem_capacity_bytes)
    except Exception:
        return 64 * 1024 * 1024  # v7x per-TC size (smallest current generation)


def _resident_spec(block_shape):
    """BlockSpec for a constant (weight/bias) operand: fetched once, so request
    single-buffering when the installed JAX supports pipeline_mode."""
    index_map = lambda i: (0,) * len(block_shape)
    if hasattr(pl, "Buffered"):
        try:
            return pl.BlockSpec(block_shape, index_map,
                                pipeline_mode=pl.Buffered(1)), 1
        except TypeError:
            pass
    return pl.BlockSpec(block_shape, index_map), 2


def _choose_tile_n(n, tile_n):
    """Round tile_n to a sublane multiple; keep >= 2 grid steps when there are
    enough rows so both TensorCores get work on v7x (harmless on v5e/v6e)."""
    tile_n = max(8, _round_up(int(tile_n), 8))
    n_pad8 = _round_up(max(int(n), 8), 8)
    if tile_n >= n_pad8:
        if n_pad8 >= 256:
            tile_n = _round_up((n_pad8 + 1) // 2, 8)
        else:
            tile_n = n_pad8
    return tile_n


def _make_mlp_kernel(num_layers, compute_dtype, output_activation=None):
    """Fused MLP body: (x @ W0 + b0) -> SiLU -> ... -> (@ W_{L-1} + b_{L-1})."""

    def kernel(x_ref, *refs):
        out_ref = refs[-1]
        h = x_ref[...]                                        # (TILE_N, D_in) compute_dtype
        for l in range(num_layers):
            w = refs[2 * l][...]                              # (D_l, D_{l+1}) compute_dtype
            b = refs[2 * l + 1][...]                          # (1, D_{l+1})   f32
            h = jnp.dot(h.astype(compute_dtype), w,
                        preferred_element_type=jnp.float32) + b
            if l < num_layers - 1:
                h = _silu(h)                                  # nn.SiLU between hidden Linears
        if output_activation is not None:
            h = output_activation(h)
        out_ref[...] = h.astype(out_ref.dtype)

    return kernel


def mlp_pallas(x, weights, biases, *, tile_n=512, compute_dtype=jnp.bfloat16,
               output_activation=None):
    """Pallas-TPU forward of the PyTorch MLP.

    x:       (N, D_in) float32 (features on lanes).
    weights: list of (D_l, D_{l+1}) float32 arrays (transpose of nn.Linear.weight).
    biases:  list of (D_{l+1},) float32 arrays.
    compute_dtype: matmul operand dtype (bf16 default; accumulation stays f32).
    """
    assert len(weights) == len(biases) and len(weights) >= 1
    n, d_in = x.shape
    dims = [int(d_in)] + [int(w.shape[1]) for w in weights]
    num_layers = len(weights)

    tile_n = _choose_tile_n(n, tile_n)
    dims_p = [_round_up(d, 128) for d in dims]          # lane-dense feature dims
    n_p = _round_up(max(n, tile_n), tile_n)
    c_itemsize = jnp.dtype(compute_dtype).itemsize

    # --- operands (pad only when actually needed; avoids extra HBM copies) ---
    x_c = x.astype(compute_dtype)
    if n_p != n or dims_p[0] != dims[0]:
        x_c = jnp.pad(x_c, ((0, n_p - n), (0, dims_p[0] - dims[0])))

    ws_c, bs_f = [], []
    for l, (w, b) in enumerate(zip(weights, biases)):
        w_c = w.astype(compute_dtype)
        if dims_p[l] != dims[l] or dims_p[l + 1] != dims[l + 1]:
            w_c = jnp.pad(w_c, ((0, dims_p[l] - dims[l]),
                                (0, dims_p[l + 1] - dims[l + 1])))
        b_f = b.astype(jnp.float32).reshape(1, -1)
        if dims_p[l + 1] != dims[l + 1]:
            b_f = jnp.pad(b_f, ((0, 0), (0, dims_p[l + 1] - dims[l + 1])))
        ws_c.append(w_c)
        bs_f.append(b_f)

    grid = (n_p // tile_n,)

    # --- specs: x streams tile-by-tile, weights/biases are VMEM-resident ---
    in_specs = [pl.BlockSpec((tile_n, dims_p[0]), lambda i: (i, 0))]
    operands = [x_c]
    w_bytes = 0
    for l in range(num_layers):
        w_spec, w_buf = _resident_spec((dims_p[l], dims_p[l + 1]))
        b_spec, b_buf = _resident_spec((1, dims_p[l + 1]))
        in_specs += [w_spec, b_spec]
        operands += [ws_c[l], bs_f[l]]
        w_bytes += w_buf * dims_p[l] * dims_p[l + 1] * c_itemsize
        w_bytes += b_buf * dims_p[l + 1] * 4

    out_spec = pl.BlockSpec((tile_n, dims_p[-1]), lambda i: (i, 0))

    # --- VMEM budget (double-buffered x/out tiles, resident weights, live f32
    #     intermediates of the unrolled layer chain), capped per-device ---
    x_tile_bytes = 2 * tile_n * dims_p[0] * c_itemsize
    out_tile_bytes = 2 * tile_n * dims_p[-1] * 4
    act_bytes = 4 * tile_n * max(dims_p) * 4
    vmem_bytes = x_tile_bytes + out_tile_bytes + w_bytes + act_bytes
    vmem_cap = _vmem_capacity_bytes()
    vmem_limit = min(max(int(1.25 * vmem_bytes), 16 * 1024 * 1024),
                     int(0.75 * vmem_cap))
    # TODO(synk): if resident weights ever exceed ~60-70% of VMEM (very wide /
    # deep MLPs on v7x's 64 MiB), stream the largest layer's weights over a
    # second grid axis with a VMEM accumulator instead of keeping all resident.

    out_p = pl.pallas_call(
        _make_mlp_kernel(num_layers, compute_dtype, output_activation),
        out_shape=jax.ShapeDtypeStruct((n_p, dims_p[-1]), jnp.float32),
        grid=grid,
        in_specs=in_specs,
        out_specs=out_spec,
        compiler_params=pltpu.CompilerParams(
            dimension_semantics=("parallel",),   # row tiles independent (megacore on v7x)
            vmem_limit_bytes=vmem_limit,
        ),
    )(*operands)

    if n_p != n or dims_p[-1] != dims[-1]:
        out_p = out_p[:n, :dims[-1]]
    return out_p


def mlp_reference(x, weights, biases, output_activation=None,
                  compute_dtype=jnp.float32):
    """Pure-JAX reference mirroring the PyTorch MLP forward (optionally with
    bf16 matmul operands to match the kernel's numerics)."""
    h = x
    for l, (w, b) in enumerate(zip(weights, biases)):
        h = jnp.dot(h.astype(compute_dtype), w.astype(compute_dtype),
                    preferred_element_type=jnp.float32) + b.astype(jnp.float32)
        if l < len(weights) - 1:
            h = jax.nn.silu(h)
    if output_activation is not None:
        h = output_activation(h)
    return h


if __name__ == "__main__":
    key = jax.random.PRNGKey(0)

    INPUT_SIZE = 128               # module-level `input_size = 128`
    HIDDEN_LAYERS = [128, 128]     # hidden_layers (lane-dense demo sizes)
    OUTPUT_SIZE = 128
    N = 512                        # rows; tile_n auto-picks 256 -> grid=(2,)

    dims = [INPUT_SIZE] + HIDDEN_LAYERS + [OUTPUT_SIZE]
    keys = jax.random.split(key, 2 * len(dims))
    x = jax.random.normal(keys[0], (N, INPUT_SIZE), jnp.float32)

    weights, biases = [], []
    for l in range(len(dims) - 1):
        bound = 1.0 / math.sqrt(dims[l])     # nn.Linear default init range
        weights.append(jax.random.uniform(keys[2 * l + 1], (dims[l], dims[l + 1]),
                                          jnp.float32, -bound, bound))
        biases.append(jax.random.uniform(keys[2 * l + 2], (dims[l + 1],),
                                         jnp.float32, -bound, bound))

    out = mlp_pallas(x, weights, biases)
    jax.block_until_ready(out)
    assert out.shape == (N, OUTPUT_SIZE)

    # Tight check against a reference that uses the same bf16-operand /
    # f32-accumulation math as the kernel.
    ref_bf16 = mlp_reference(x, weights, biases, compute_dtype=jnp.bfloat16)
    err_bf16 = float(jnp.max(jnp.abs(out - ref_bf16)))
    assert jnp.allclose(out, ref_bf16, atol=2e-3, rtol=2e-3), f"bf16-ref max_err={err_bf16}"

    # Loose sanity check against the full-f32 reference (bf16 operand rounding).
    ref_f32 = mlp_reference(x, weights, biases)
    err_f32 = float(jnp.max(jnp.abs(out - ref_f32)))
    assert err_f32 < 5e-2, f"f32-ref max_err={err_f32}"

    print("KERNEL_OK")
</pallas_src>

<mosaic_0001>
module attributes {stable_mosaic.version = 11 : i64} {
  func.func @kernel(%arg0: i32, %arg1: memref<256x128xbf16, #tpu.memory_space<vmem>>, %arg2: memref<128x128xbf16, #tpu.memory_space<vmem>>, %arg3: memref<1x128xf32, #tpu.memory_space<vmem>>, %arg4: memref<128x128xbf16, #tpu.memory_space<vmem>>, %arg5: memref<1x128xf32, #tpu.memory_space<vmem>>, %arg6: memref<128x128xbf16, #tpu.memory_space<vmem>>, %arg7: memref<1x128xf32, #tpu.memory_space<vmem>>, %arg8: memref<256x128xf32, #tpu.memory_space<vmem>>) attributes {dimension_semantics = [#tpu.dimension_semantics<parallel>], iteration_bounds = array<i64: 2>, scalar_prefetch = 0 : i64, scratch_operands = 0 : i64, tpu.core_type = #tpu.core_type<tc>, window_params = [{transform_indices = @transform_0, window_bounds = array<i64: 256, 128>}, {pipeline_mode = #tpu.pipeline_mode<synchronous>, transform_indices = @transform_1, window_bounds = array<i64: 128, 128>}, {pipeline_mode = #tpu.pipeline_mode<synchronous>, transform_indices = @transform_2, window_bounds = array<i64: 1, 128>}, {pipeline_mode = #tpu.pipeline_mode<synchronous>, transform_indices = @transform_3, window_bounds = array<i64: 128, 128>}, {pipeline_mode = #tpu.pipeline_mode<synchronous>, transform_indices = @transform_4, window_bounds = array<i64: 1, 128>}, {pipeline_mode = #tpu.pipeline_mode<synchronous>, transform_indices = @transform_5, window_bounds = array<i64: 128, 128>}, {pipeline_mode = #tpu.pipeline_mode<synchronous>, transform_indices = @transform_6, window_bounds = array<i64: 1, 128>}, {transform_indices = @transform_7, window_bounds = array<i64: 256, 128>}]} {
    %c0 = arith.constant 0 : index
    %c0_0 = arith.constant 0 : index
    %0 = vector.load %arg1[%c0, %c0_0] : memref<256x128xbf16, #tpu.memory_space<vmem>>, vector<256x128xbf16>
    %c0_1 = arith.constant 0 : index
    %c0_2 = arith.constant 0 : index
    %1 = vector.load %arg2[%c0_1, %c0_2] : memref<128x128xbf16, #tpu.memory_space<vmem>>, vector<128x128xbf16>
    %c0_3 = arith.constant 0 : index
    %c0_4 = arith.constant 0 : index
    %2 = vector.load %arg3[%c0_3, %c0_4] : memref<1x128xf32, #tpu.memory_space<vmem>>, vector<1x128xf32>
    %cst = arith.constant dense<0.000000e+00> : vector<256x128xf32>
    %3 = tpu.matmul %0, %1, %cst {dimension_numbers = #tpu.dot_dimension_numbers<[1], [0], [0], [1], [0, 0, 1, 1], [], []>} : vector<256x128xbf16>, vector<128x128xbf16>, vector<256x128xf32> -> vector<256x128xf32>
    %4 = vector.broadcast %2 : vector<1x128xf32> to vector<256x128xf32>
    %5 = arith.addf %3, %4 : vector<256x128xf32>
    %6 = arith.negf %5 : vector<256x128xf32>
    %7 = math.exp %6 : vector<256x128xf32>
    %cst_5 = arith.constant 1.000000e+00 : f32
    %8 = vector.broadcast %cst_5 : f32 to vector<256x128xf32>
    %9 = arith.addf %8, %7 : vector<256x128xf32>
    %10 = arith.divf %8, %9 : vector<256x128xf32>
    %11 = arith.mulf %5, %10 : vector<256x128xf32>
    %c0_6 = arith.constant 0 : index
    %c0_7 = arith.constant 0 : index
    %12 = vector.load %arg4[%c0_6, %c0_7] : memref<128x128xbf16, #tpu.memory_space<vmem>>, vector<128x128xbf16>
    %c0_8 = arith.constant 0 : index
    %c0_9 = arith.constant 0 : index
    %13 = vector.load %arg5[%c0_8, %c0_9] : memref<1x128xf32, #tpu.memory_space<vmem>>, vector<1x128xf32>
    %14 = arith.truncf %11 : vector<256x128xf32> to vector<256x128xbf16>
    %cst_10 = arith.constant dense<0.000000e+00> : vector<256x128xf32>
    %15 = tpu.matmul %14, %12, %cst_10 {dimension_numbers = #tpu.dot_dimension_numbers<[1], [0], [0], [1], [0, 0, 1, 1], [], []>} : vector<256x128xbf16>, vector<128x128xbf16>, vector<256x128xf32> -> vector<256x128xf32>
    %16 = vector.broadcast %13 : vector<1x128xf32> to vector<256x128xf32>
    %17 = arith.addf %15, %16 : vector<256x128xf32>
    %18 = arith.negf %17 : vector<256x128xf32>
    %19 = math.exp %18 : vector<256x128xf32>
    %cst_11 = arith.constant 1.000000e+00 : f32
    %20 = vector.broadcast %cst_11 : f32 to vector<256x128xf32>
    %21 = arith.addf %20, %19 : vector<256x128xf32>
    %22 = arith.divf %20, %21 : vector<256x128xf32>
    %23 = arith.mulf %17, %22 : vector<256x128xf32>
    %c0_12 = arith.constant 0 : index
    %c0_13 = arith.constant 0 : index
    %24 = vector.load %arg6[%c0_12, %c0_13] : memref<128x128xbf16, #tpu.memory_space<vmem>>, vector<128x128xbf16>
    %c0_14 = arith.constant 0 : index
    %c0_15 = arith.constant 0 : index
    %25 = vector.load %arg7[%c0_14, %c0_15] : memref<1x128xf32, #tpu.memory_space<vmem>>, vector<1x128xf32>
    %26 = arith.truncf %23 : vector<256x128xf32> to vector<256x128xbf16>
    %cst_16 = arith.constant dense<0.000000e+00> : vector<256x128xf32>
    %27 = tpu.matmul %26, %24, %cst_16 {dimension_numbers = #tpu.dot_dimension_numbers<[1], [0], [0], [1], [0, 0, 1, 1], [], []>} : vector<256x128xbf16>, vector<128x128xbf16>, vector<256x128xf32> -> vector<256x128xf32>
    %28 = vector.broadcast %25 : vector<1x128xf32> to vector<256x128xf32>
    %29 = arith.addf %27, %28 : vector<256x128xf32>
    %c0_17 = arith.constant 0 : index
    %c0_18 = arith.constant 0 : index
    %30 = vector.load %arg8[%c0_17, %c0_18] : memref<256x128xf32, #tpu.memory_space<vmem>>, vector<256x128xf32>
    tpu.vector_store %arg8[%c0_17, %c0_18], %29 {strides = array<i32>} : memref<256x128xf32, #tpu.memory_space<vmem>>, vector<256x128xf32>,
    return
  }
  func.func @transform_0(%arg0: i32) -> (i32, i32) {
    %c0_i32 = arith.constant 0 : i32
    %c0_i32_0 = arith.constant 0 : i32
    return %arg0, %c0_i32 : i32, i32
  }
  func.func @transform_1(%arg0: i32) -> (i32, i32) {
    %c0_i32 = arith.constant 0 : i32
    %c0_i32_0 = arith.constant 0 : i32
    %c0_i32_1 = arith.constant 0 : i32
    return %c0_i32, %c0_i32_0 : i32, i32
  }
  func.func @transform_2(%arg0: i32) -> (i32, i32) {
    %c0_i32 = arith.constant 0 : i32
    %c0_i32_0 = arith.constant 0 : i32
    %c0_i32_1 = arith.constant 0 : i32
    return %c0_i32, %c0_i32_0 : i32, i32
  }
  func.func @transform_3(%arg0: i32) -> (i32, i32) {
    %c0_i32 = arith.constant 0 : i32
    %c0_i32_0 = arith.constant 0 : i32
    %c0_i32_1 = arith.constant 0 : i32
    return %c0_i32, %c0_i32_0 : i32, i32
  }
  func.func @transform_4(%arg0: i32) -> (i32, i32) {
    %c0_i32 = arith.constant 0 : i32
    %c0_i32_0 = arith.constant 0 : i32
    %c0_i32_1 = arith.constant 0 : i32
    return %c0_i32, %c0_i32_0 : i32, i32
  }
  func.func @transform_5(%arg0: i32) -> (i32, i32) {
    %c0_i32 = arith.constant 0 : i32
    %c0_i32_0 = arith.constant 0 : i32
    %c0_i32_1 = arith.constant 0 : i32
    return %c0_i32, %c0_i32_0 : i32, i32
  }
  func.func @transform_6(%arg0: i32) -> (i32, i32) {
    %c0_i32 = arith.constant 0 : i32
    %c0_i32_0 = arith.constant 0 : i32
    %c0_i32_1 = arith.constant 0 : i32
    return %c0_i32, %c0_i32_0 : i32, i32
  }
  func.func @transform_7(%arg0: i32) -> (i32, i32) {
    %c0_i32 = arith.constant 0 : i32
    %c0_i32_0 = arith.constant 0 : i32
    return %arg0, %c0_i32 : i32, i32
  }
}

</mosaic_0001>

<llo_original>
// kernel: tpu_custom_call.1
$region0: #{tpu_custom_call.1}
  #allocation0 [shape = 'u32[]', space=smem, size = 0x4, offset = 0x4, fixed_abs, tag = 'smem constant byte address 0x4 - core index']
  #allocation1 [shape = 'u32[144,128]{1,0:T(1,128)}', space=vmem, size = 0x12000, scoped, tag = 'internal scratch']
  %s0 = inlined_call_operand.hbm [shape: bf16[512,128], index: 0, kind: input, shape index: {}]
  %s1 = inlined_call_operand.hbm [shape: bf16[128,128], index: 1, kind: input, shape index: {}]
  %s2 = inlined_call_operand.vmem [shape: f32[1,128], index: 2, kind: input, shape index: {}]
  %s3 = inlined_call_operand.hbm [shape: bf16[128,128], index: 3, kind: input, shape index: {}]
  %s4 = inlined_call_operand.vmem [shape: f32[1,128], index: 4, kind: input, shape index: {}]
  %s5 = inlined_call_operand.hbm [shape: bf16[128,128], index: 5, kind: input, shape index: {}]
  %s6 = inlined_call_operand.vmem [shape: f32[1,128], index: 6, kind: input, shape index: {}]
  %s7 = inlined_call_operand.hbm [shape: f32[512,128], index: 7, kind: output, shape index: {}]
  %s8 = sld [smem:[#allocation0]]
  $region77: #{tpu_custom_call.1} parent=0
    _
  %s10 = ssub.s32 1, %s8
  %s11 = scalar_select 0, %s10, %s8
  $region1: #{tpu_custom_call.1} parent=0
    #allocation2 [shape = 'u8[131072]{0}', space=vmem, size = 0x20000, scoped, tag = 'input window, operand 0']
    #allocation3 [shape = 's32[2]{0}', space=sflag, size = 0x8, scoped, tag = 'scoped memory for tpu_custom_call.1']
    #allocation4 [shape = 's32[2]{0}', space=sflag, size = 0x8, scoped, tag = 'scoped memory for tpu_custom_call.1']
    #allocation5 [shape = 'u8[32768]{0}', space=vmem, size = 0x8000, scoped, tag = 'input window, operand 1, single buffered']
    #allocation6 [shape = 's32[1]{0}', space=sflag, size = 0x4, scoped, tag = 'scoped memory for tpu_custom_call.1']
    #allocation7 [shape = 'u8[32768]{0}', space=vmem, size = 0x8000, scoped, tag = 'input window, operand 3, single buffered']
    #allocation8 [shape = 'u8[32768]{0}', space=vmem, size = 0x8000, scoped, tag = 'input window, operand 5, single buffered']
    #allocation9 [shape = 's32[1]{0}', space=sflag, size = 0x4, scoped, tag = 'scoped memory for tpu_custom_call.1']
    #allocation10 [shape = 'u8[262144]{0}', space=vmem, size = 0x40000, scoped, tag = 'output window, operand 0']
    %12 = vsyncpa [#allocation3], 0
    %s13 = scalar_lea.sflag [#allocation3], 1
    %14 = vsyncpa %s13, 0
    %15 = vsyncpa [#allocation6], 0
    %16 = vsyncpa [#allocation9], 0
    %17 = vsyncpa [#allocation4], 0
    %s18 = scalar_lea.sflag [#allocation4], 1
    %19 = vsyncpa %s18, 0
    loop: start=0, step=1, limit=4
    $region2: #{tpu_custom_call.1} parent=1 // loop_pre_header
      _
    $region3: #{tpu_custom_call.1} parent=1 // loop_header
      %s21 = sphi 0, %s25
      %p22 = scmp.ge.s32.totalorder %s21, 4
      %s31 = sphi 0, %s33
      %s34 = sphi 0, %s31
      %s35 = sphi 0, %s34
      %s51 = sphi 0, %s35
      %s55 = sphi 0, %s55
      %s57 = sphi 0, %s55
      %s58 = sphi 0, %s57
      %s72 = sphi 0, %s58
      %s76 = sphi 0, %s76
      %s78 = sphi 0, %s76
      %s79 = sphi 0, %s78
      %s93 = sphi 0, %s79
      %s97 = sphi 0, %s97
      %s99 = sphi 0, %s97
      %s100 = sphi 0, %s99
      %s114 = sphi 0, %s100
      %s118 = sphi 0, %s118
      %s120 = sphi 0, %s118
      %s121 = sphi 0, %s120
      %s135 = sphi 0, %s121
      %s139 = sphi 0, %s139
      %s141 = sphi 0, %s139
      %s142 = sphi 0, %s141
      %s156 = sphi 0, %s142
      %s160 = sphi 0, %s160
      %s162 = sphi 0, %s160
      %s163 = sphi 0, %s162
      %s177 = sphi 0, %s163
      %s183 = sphi 0, %s185
      %s186 = sphi 0, %s183
      %s187 = sphi 0, %s186
      %s203 = sphi 0, %s187
    $region4: #{tpu_custom_call.1} parent=1 // loop_header_branch
      %24 = sbr.rel (%p22) target = $region8
    $region5: #{tpu_custom_call.1} parent=1 // loop_body
      %s26 = ssub.s32 %s21, 1
      %s27 = ssub.s32 %s21, 2
      %s28 = sadd.s32 %s21, 1
      %s29 = ssub.s32 %s21, %s28
      %p30 = scmp.eq.s32.totalorder %s29, 0
      %s32 = sadd.s32 %s31, 1
      %s33 = scalar_select %p30, %s31, %s32
      %p36 = pneg %p30
      %p37 = scmp.eq.s32.totalorder %s21, 1
      %p38 = por %p36, %p37
      %p39 = scmp.ne.s32.totalorder %s31, %s34
      %p40 = scmp.eq.s32.totalorder %s21, 0
      %p41 = por %p39, %p40
      %p42 = scmp.ne.s32.totalorder %s31, %s34
      %p43 = scmp.eq.s32.totalorder %s26, 1
      %p44 = por %p42, %p43
      %p45 = scmp.ne.s32.totalorder %s34, %s35
      %p46 = scmp.eq.s32.totalorder %s26, 0
      %p47 = por %p45, %p46
      %p48 = scmp.ne.s32.totalorder %s34, %s35
      %p49 = scmp.eq.s32.totalorder %s27, 1
      %p50 = por %p48, %p49
      %p52 = scmp.ne.s32.totalorder %s35, %s51
      %p53 = scmp.eq.s32.totalorder %s27, 0
      %p54 = por %p52, %p53
      %s56 = sadd.s32 %s55, 1
      %p59 = scmp.eq.s32.totalorder %s21, 1
      %p60 = scmp.ne.s32.totalorder %s55, %s57
      %p61 = scmp.eq.s32.totalorder %s21, 0
      %p62 = por %p60, %p61
      %p63 = scmp.ne.s32.totalorder %s55, %s57
      %p64 = scmp.eq.s32.totalorder %s26, 1
      %p65 = por %p63, %p64
      %p66 = scmp.ne.s32.totalorder %s57, %s58
      %p67 = scmp.eq.s32.totalorder %s26, 0
      %p68 = por %p66, %p67
      %p69 = scmp.ne.s32.totalorder %s57, %s58
      %p70 = scmp.eq.s32.totalorder %s27, 1
      %p71 = por %p69, %p70
      %p73 = scmp.ne.s32.totalorder %s58, %s72
      %p74 = scmp.eq.s32.totalorder %s27, 0
      %p75 = por %p73, %p74
      %s77 = sadd.s32 %s76, 1
      %p80 = scmp.eq.s32.totalorder %s21, 1
      %p81 = scmp.ne.s32.totalorder %s76, %s78
      %p82 = scmp.eq.s32.totalorder %s21, 0
      %p83 = por %p81, %p82
      %p84 = scmp.ne.s32.totalorder %s76, %s78
      %p85 = scmp.eq.s32.totalorder %s26, 1
      %p86 = por %p84, %p85
      %p87 = scmp.ne.s32.totalorder %s78, %s79
      %p88 = scmp.eq.s32.totalorder %s26, 0
      %p89 = por %p87, %p88
      %p90 = scmp.ne.s32.totalorder %s78, %s79
      %p91 = scmp.eq.s32.totalorder %s27, 1
      %p92 = por %p90, %p91
      %p94 = scmp.ne.s32.totalorder %s79, %s93
      %p95 = scmp.eq.s32.totalorder %s27, 0
      %p96 = por %p94, %p95
      %s98 = sadd.s32 %s97, 1
      %p101 = scmp.eq.s32.totalorder %s21, 1
      %p102 = scmp.ne.s32.totalorder %s97, %s99
      %p103 = scmp.eq.s32.totalorder %s21, 0
      %p104 = por %p102, %p103
      %p105 = scmp.ne.s32.totalorder %s97, %s99
      %p106 = scmp.eq.s32.totalorder %s26, 1
      %p107 = por %p105, %p106
      %p108 = scmp.ne.s32.totalorder %s99, %s100
      %p109 = scmp.eq.s32.totalorder %s26, 0
      %p110 = por %p108, %p109
      %p111 = scmp.ne.s32.totalorder %s99, %s100
      %p112 = scmp.eq.s32.totalorder %s27, 1
      %p113 = por %p111, %p112
      %p115 = scmp.ne.s32.totalorder %s100, %s114
      %p116 = scmp.eq.s32.totalorder %s27, 0
      %p117 = por %p115, %p116
      %s119 = sadd.s32 %s118, 1
      %p122 = scmp.eq.s32.totalorder %s21, 1
      %p123 = scmp.ne.s32.totalorder %s118, %s120
      %p124 = scmp.eq.s32.totalorder %s21, 0
      %p125 = por %p123, %p124
      %p126 = scmp.ne.s32.totalorder %s118, %s120
      %p127 = scmp.eq.s32.totalorder %s26, 1
      %p128 = por %p126, %p127
      %p129 = scmp.ne.s32.totalorder %s120, %s121
      %p130 = scmp.eq.s32.totalorder %s26, 0
      %p131 = por %p129, %p130
      %p132 = scmp.ne.s32.totalorder %s120, %s121
      %p133 = scmp.eq.s32.totalorder %s27, 1
      %p134 = por %p132, %p133
      %p136 = scmp.ne.s32.totalorder %s121, %s135
      %p137 = scmp.eq.s32.totalorder %s27, 0
      %p138 = por %p136, %p137
      %s140 = sadd.s32 %s139, 1
      %p143 = scmp.eq.s32.totalorder %s21, 1
      %p144 = scmp.ne.s32.totalorder %s139, %s141
      %p145 = scmp.eq.s32.totalorder %s21, 0
      %p146 = por %p144, %p145
      %p147 = scmp.ne.s32.totalorder %s139, %s141
      %p148 = scmp.eq.s32.totalorder %s26, 1
      %p149 = por %p147, %p148
      %p150 = scmp.ne.s32.totalorder %s141, %s142
      %p151 = scmp.eq.s32.totalorder %s26, 0
      %p152 = por %p150, %p151
      %p153 = scmp.ne.s32.totalorder %s141, %s142
      %p154 = scmp.eq.s32.totalorder %s27, 1
      %p155 = por %p153, %p154
      %p157 = scmp.ne.s32.totalorder %s142, %s156
      %p158 = scmp.eq.s32.totalorder %s27, 0
      %p159 = por %p157, %p158
      %s161 = sadd.s32 %s160, 1
      %p164 = scmp.eq.s32.totalorder %s21, 1
      %p165 = scmp.ne.s32.totalorder %s160, %s162
      %p166 = scmp.eq.s32.totalorder %s21, 0
      %p167 = por %p165, %p166
      %p168 = scmp.ne.s32.totalorder %s160, %s162
      %p169 = scmp.eq.s32.totalorder %s26, 1
      %p170 = por %p168, %p169
      %p171 = scmp.ne.s32.totalorder %s162, %s163
      %p172 = scmp.eq.s32.totalorder %s26, 0
      %p173 = por %p171, %p172
      %p174 = scmp.ne.s32.totalorder %s162, %s163
      %p175 = scmp.eq.s32.totalorder %s27, 1
      %p176 = por %p174, %p175
      %p178 = scmp.ne.s32.totalorder %s163, %s177
      %p179 = scmp.eq.s32.totalorder %s27, 0
      %p180 = por %p178, %p179
      %s181 = ssub.s32 %s21, %s28
      %p182 = scmp.eq.s32.totalorder %s181, 0
      %s184 = sadd.s32 %s183, 1
      %s185 = scalar_select %p182, %s183, %s184
      %p188 = pneg %p182
      %p189 = scmp.eq.s32.totalorder %s21, 1
      %p190 = por %p188, %p189
      %p191 = scmp.ne.s32.totalorder %s183, %s186
      %p192 = scmp.eq.s32.totalorder %s21, 0
      %p193 = por %p191, %p192
      %p194 = scmp.ne.s32.totalorder %s183, %s186
      %p195 = scmp.eq.s32.totalorder %s26, 1
      %p196 = por %p194, %p195
      %p197 = scmp.ne.s32.totalorder %s186, %s187
      %p198 = scmp.eq.s32.totalorder %s26, 0
      %p199 = por %p197, %p198
      %p200 = scmp.ne.s32.totalorder %s186, %s187
      %p201 = scmp.eq.s32.totalorder %s27, 1
      %p202 = por %p200, %p201
      %p204 = scmp.ne.s32.totalorder %s187, %s203
      %p205 = scmp.eq.s32.totalorder %s27, 0
      %p206 = por %p204, %p205
      %p207 = scmp.le.s32.totalorder 1, %s21
      %p208 = scmp.lt.s32.totalorder %s21, 3
      %p209 = pnand %p207, %p208
      %p210 = pneg %p209
      // Predicated region
      $region9: #{tpu_custom_call.1} parent=5 // pred_check
        _
      $region10: #{tpu_custom_call.1} parent=5 // pred_check_branch
        %212 = sbr.rel (%p209) target = $region12
      $region11: #{tpu_custom_call.1} parent=5 // pred_region
        %s213 = ssub.s32 %s21, 1
        // Predicated region
        $region13: #{tpu_custom_call.1} parent=11 // pred_check
          %p214 = pneg %p68
        $region14: #{tpu_custom_call.1} parent=11 // pred_check_branch
          %216 = sbr.rel (%p214) target = $region16
        $region15: #{tpu_custom_call.1} parent=11 // pred_region
          %s218 = ssub.s32 1024, 1024
          %219 = vsyncadd [#allocation6], %s218
          %s220 = sshll.u32 [#allocation5], 4
          %s221 = int_to_ptr.vmem [resolvable:$true] %s220
          %226 = dma.hbm_to_vmem [thread:$0]  %s1, 1024, %s221, [#allocation6], 64, 64, 4
        $region16: #{tpu_custom_call.1} parent=11 // pred_fallthru
          _
        // Predicated region
        $region17: #{tpu_custom_call.1} parent=11 // pred_check
          %p227 = pneg %p89
        $region18: #{tpu_custom_call.1} parent=11 // pred_check_branch
          %229 = sbr.rel (%p227) target = $region20
        $region19: #{tpu_custom_call.1} parent=11 // pred_region
          _
        $region20: #{tpu_custom_call.1} parent=11 // pred_fallthru
          _
        // Predicated region
        $region21: #{tpu_custom_call.1} parent=11 // pred_check
          %p230 = pneg %p110
        $region22: #{tpu_custom_call.1} parent=11 // pred_check_branch
          %232 = sbr.rel (%p230) target = $region24
        $region23: #{tpu_custom_call.1} parent=11 // pred_region
          %s234 = ssub.s32 1024, 1024
          %235 = vsyncadd [#allocation6], %s234
          %s236 = sshll.u32 [#allocation7], 4
          %s237 = int_to_ptr.vmem [resolvable:$true] %s236
          %242 = dma.hbm_to_vmem [thread:$0]  %s3, 1024, %s237, [#allocation6], 64, 64, 4
        $region24: #{tpu_custom_call.1} parent=11 // pred_fallthru
          _
        // Predicated region
        $region25: #{tpu_custom_call.1} parent=11 // pred_check
          %p243 = pneg %p131
        $region26: #{tpu_custom_call.1} parent=11 // pred_check_branch
          %245 = sbr.rel (%p243) target = $region28
        $region27: #{tpu_custom_call.1} parent=11 // pred_region
          _
        $region28: #{tpu_custom_call.1} parent=11 // pred_fallthru
          _
        // Predicated region
        $region29: #{tpu_custom_call.1} parent=11 // pred_check
          %p246 = pneg %p152
        $region30: #{tpu_custom_call.1} parent=11 // pred_check_branch
          %248 = sbr.rel (%p246) target = $region32
        $region31: #{tpu_custom_call.1} parent=11 // pred_region
          %s250 = ssub.s32 1024, 1024
          %251 = vsyncadd [#allocation9], %s250
          %s252 = sshll.u32 [#allocation8], 4
          %s253 = int_to_ptr.vmem [resolvable:$true] %s252
          %258 = dma.hbm_to_vmem [thread:$0]  %s5, 1024, %s253, [#allocation9], 64, 64, 4
        $region32: #{tpu_custom_call.1} parent=11 // pred_fallthru
          _
        // Predicated region
        $region33: #{tpu_custom_call.1} parent=11 // pred_check
          %p259 = pneg %p173
        $region34: #{tpu_custom_call.1} parent=11 // pred_check_branch
          %261 = sbr.rel (%p259) target = $region36
        $region35: #{tpu_custom_call.1} parent=11 // pred_region
          _
        $region36: #{tpu_custom_call.1} parent=11 // pred_fallthru
          _
      $region12: #{tpu_custom_call.1} parent=5 // pred_fallthru
        _
      %p262 = scmp.lt.s32.totalorder %s21, 2
      // Predicated region
      $region37: #{tpu_custom_call.1} parent=5 // pred_check
        %p263 = pneg %p262
      $region38: #{tpu_custom_call.1} parent=5 // pred_check_branch
        %265 = sbr.rel (%p263) target = $region40
      $region39: #{tpu_custom_call.1} parent=5 // pred_region
        // Predicated region
        $region41: #{tpu_custom_call.1} parent=39 // pred_check
          %p266 = pneg %p41
        $region42: #{tpu_custom_call.1} parent=39 // pred_check_branch
          %268 = sbr.rel (%p266) target = $region44
        $region43: #{tpu_custom_call.1} parent=39 // pred_region
          %s269 = sand.u32 %s31, 1
          %s270 = scalar_lea.sflag [#allocation3], %s269
          %s271 = sand.u32 %s31, 1
          %s272 = smul.addr %s271, 128
          %s273 = scalar_lea.vmem [#allocation2], %s272
          %s274 = smul.u32 32, %s21
          %s276 = ssub.s32 2048, 2048
          %277 = vsyncadd %s270, %s276
          %s278 = smul.addr %s274, 64
          %s279 = scalar_lea.hbm %s0, %s278
          %s280 = sshll.u32 %s273, 4
          %s281 = int_to_ptr.vmem [resolvable:$true] %s280
          %286 = dma.hbm_to_vmem [thread:$0]  %s279, 2048, %s281, %s270, 64, 64, 4
        $region44: #{tpu_custom_call.1} parent=39 // pred_fallthru
          _
      $region40: #{tpu_custom_call.1} parent=5 // pred_fallthru
        _
      %p287 = scmp.le.s32.totalorder 1, %s21
      %p288 = scmp.lt.s32.totalorder %s21, 3
      %p289 = pnand %p287, %p288
      %p290 = pneg %p289
      // Predicated region
      $region45: #{tpu_custom_call.1} parent=5 // pred_check
        _
      $region46: #{tpu_custom_call.1} parent=5 // pred_check_branch
        %292 = sbr.rel (%p289) target = $region48
      $region47: #{tpu_custom_call.1} parent=5 // pred_region
        %s293 = ssub.s32 %s21, 1
        %s294 = sand.u32 %s34, 1
        %s295 = scalar_lea.sflag [#allocation3], %s294
        %s296 = sand.u32 %s34, 1
        %s297 = smul.addr %s296, 128
        %s298 = scalar_lea.vmem [#allocation2], %s297
        // Predicated region
        $region49: #{tpu_custom_call.1} parent=47 // pred_check
          %p299 = pneg %p47
        $region50: #{tpu_custom_call.1} parent=47 // pred_check_branch
          %301 = sbr.rel (%p299) target = $region52
        $region51: #{tpu_custom_call.1} parent=47 // pred_region
          %302 = dma.done %s295, 2048
        $region52: #{tpu_custom_call.1} parent=47 // pred_fallthru
          _
        // Predicated region
        $region53: #{tpu_custom_call.1} parent=47 // pred_check
          %p303 = pneg %p68
        $region54: #{tpu_custom_call.1} parent=47 // pred_check_branch
          %305 = sbr.rel (%p303) target = $region56
        $region55: #{tpu_custom_call.1} parent=47 // pred_region
          %306 = dma.done [#allocation6], 1024
        $region56: #{tpu_custom_call.1} parent=47 // pred_fallthru
          _
        // Predicated region
        $region57: #{tpu_custom_call.1} parent=47 // pred_check
          %p307 = pneg %p110
        $region58: #{tpu_custom_call.1} parent=47 // pred_check_branch
          %309 = sbr.rel (%p307) target = $region60
        $region59: #{tpu_custom_call.1} parent=47 // pred_region
          %310 = dma.done [#allocation6], 1024
        $region60: #{tpu_custom_call.1} parent=47 // pred_fallthru
          _
        // Predicated region
        $region61: #{tpu_custom_call.1} parent=47 // pred_check
          %p311 = pneg %p152
        $region62: #{tpu_custom_call.1} parent=47 // pred_check_branch
          %313 = sbr.rel (%p311) target = $region64
        $region63: #{tpu_custom_call.1} parent=47 // pred_region
          %314 = dma.done [#allocation9], 1024
        $region64: #{tpu_custom_call.1} parent=47 // pred_fallthru
          _
        %s315 = sand.u32 %s34, 1
        %s316 = scalar_lea.sflag [#allocation3], %s315
        %s317 = sand.u32 %s34, 1
        %s318 = smul.addr %s317, 128
        %s319 = scalar_lea.vmem [#allocation2], %s318
        %p320 = pneg %p47
        %p321 = pneg %p44
        %p322 = pneg %p68
        %p323 = pneg %p65
        %p324 = pneg %p89
        %p325 = pneg %p86
        %p326 = pneg %p110
        %p327 = pneg %p107
        %p328 = pneg %p131
        %p329 = pneg %p128
        %p330 = pneg %p152
        %p331 = pneg %p149
        %p332 = pneg %p173
        %p333 = pneg %p170
        %p334 = pneg %p199
        %p335 = pneg %p196
        %s336 = sand.u32 %s186, 1
        %s337 = scalar_lea.sflag [#allocation4], %s336
        %s338 = sand.u32 %s186, 1
        %s339 = smul.addr %s338, 256
        %s340 = scalar_lea.vmem [#allocation10], %s339
        %s341 = smul.u32 32, %s26
        %s342 = smul.u32 32, %s26
        %v344 = vld [vmem:[%s298] sm:$0xf]
        %v345 = vld [vmem:[%s298 + $0x4] sm:$0xf]
        %v346 = vld [vmem:[%s298 + $0x8] sm:$0xf]
        %v347 = vld [vmem:[%s298 + $0xc] sm:$0xf]
        %v348 = vld [vmem:[%s298 + $0x10] sm:$0xf]
        %v349 = vld [vmem:[%s298 + $0x14] sm:$0xf]
        %v350 = vld [vmem:[%s298 + $0x18] sm:$0xf]
        %v351 = vld [vmem:[%s298 + $0x1c] sm:$0xf]
        %v352 = vld [vmem:[%s298 + $0x20] sm:$0xf]
        %v353 = vld [vmem:[%s298 + $0x24] sm:$0xf]
        %v354 = vld [vmem:[%s298 + $0x28] sm:$0xf]
        %v355 = vld [vmem:[%s298 + $0x2c] sm:$0xf]
        %v356 = vld [vmem:[%s298 + $0x30] sm:$0xf]
        %v357 = vld [vmem:[%s298 + $0x34] sm:$0xf]
        %v358 = vld [vmem:[%s298 + $0x38] sm:$0xf]
        %v359 = vld [vmem:[%s298 + $0x3c] sm:$0xf]
        %v360 = vld [vmem:[%s298 + $0x40] sm:$0xf]
        %v361 = vld [vmem:[%s298 + $0x44] sm:$0xf]
        %v362 = vld [vmem:[%s298 + $0x48] sm:$0xf]
        %v363 = vld [vmem:[%s298 + $0x4c] sm:$0xf]
        %v364 = vld [vmem:[%s298 + $0x50] sm:$0xf]
        %v365 = vld [vmem:[%s298 + $0x54] sm:$0xf]
        %v366 = vld [vmem:[%s298 + $0x58] sm:$0xf]
        %v367 = vld [vmem:[%s298 + $0x5c] sm:$0xf]
        %v368 = vld [vmem:[%s298 + $0x60] sm:$0xf]
        %v369 = vld [vmem:[%s298 + $0x64] sm:$0xf]
        %v370 = vld [vmem:[%s298 + $0x68] sm:$0xf]
        %v371 = vld [vmem:[%s298 + $0x6c] sm:$0xf]
        %v372 = vld [vmem:[%s298 + $0x70] sm:$0xf]
        %v373 = vld [vmem:[%s298 + $0x74] sm:$0xf]
        %v374 = vld [vmem:[%s298 + $0x78] sm:$0xf]
        %v375 = vld [vmem:[%s298 + $0x7c] sm:$0xf]
        %v376 = vld [vmem:[#allocation5] sm:$0xf]
        %v377 = vld [vmem:[#allocation5 + $0x4] sm:$0xf]
        %v378 = vld [vmem:[#allocation5 + $0x8] sm:$0xf]
        %v379 = vld [vmem:[#allocation5 + $0xc] sm:$0xf]
        %v380 = vld [vmem:[#allocation5 + $0x10] sm:$0xf]
        %v381 = vld [vmem:[#allocation5 + $0x14] sm:$0xf]
        %v382 = vld [vmem:[#allocation5 + $0x18] sm:$0xf]
        %v383 = vld [vmem:[#allocation5 + $0x1c] sm:$0xf]
        %v384 = vld [vmem:[#allocation5 + $0x20] sm:$0xf]
        %v385 = vld [vmem:[#allocation5 + $0x24] sm:$0xf]
        %v386 = vld [vmem:[#allocation5 + $0x28] sm:$0xf]
        %v387 = vld [vmem:[#allocation5 + $0x2c] sm:$0xf]
        %v388 = vld [vmem:[#allocation5 + $0x30] sm:$0xf]
        %v389 = vld [vmem:[#allocation5 + $0x34] sm:$0xf]
        %v390 = vld [vmem:[#allocation5 + $0x38] sm:$0xf]
        %v391 = vld [vmem:[#allocation5 + $0x3c] sm:$0xf]
        %v392 = vld [vmem:[%s2] sm:$0x1]
        %v394 = vlaneseq
        %v395 = vshrl.u32 %v394, 7
        %v396 = vsub.s32 0, %v395
        %v397 = vrot.slane %v392, %v396
        %v431 = vunpack.c.l.b16 %v344
        %v432 = vunpack.c.l.b16 %v345
        %v433 = vunpack.c.l.b16 %v346
        %v434 = vunpack.c.l.b16 %v347
        %v435 = vunpack.c.l.b16 %v348
        %v436 = vunpack.c.l.b16 %v349
        %v437 = vunpack.c.l.b16 %v350
        %v438 = vunpack.c.l.b16 %v351
        %v439 = vunpack.c.l.b16 %v352
        %v440 = vunpack.c.l.b16 %v353
        %v441 = vunpack.c.l.b16 %v354
        %v442 = vunpack.c.l.b16 %v355
        %v443 = vunpack.c.l.b16 %v356
        %v444 = vunpack.c.l.b16 %v357
        %v445 = vunpack.c.l.b16 %v358
        %v446 = vunpack.c.l.b16 %v359
        %v447 = vunpack.c.l.b16 %v360
        %v448 = vunpack.c.l.b16 %v361
        %v449 = vunpack.c.l.b16 %v362
        %v450 = vunpack.c.l.b16 %v363
        %v451 = vunpack.c.l.b16 %v364
        %v452 = vunpack.c.l.b16 %v365
        %v453 = vunpack.c.l.b16 %v366
        %v454 = vunpack.c.l.b16 %v367
        %v455 = vunpack.c.l.b16 %v368
        %v456 = vunpack.c.l.b16 %v369
        %v457 = vunpack.c.l.b16 %v370
        %v458 = vunpack.c.l.b16 %v371
        %v459 = vunpack.c.l.b16 %v372
        %v460 = vunpack.c.l.b16 %v373
        %v461 = vunpack.c.l.b16 %v374
        %v462 = vunpack.c.l.b16 %v375
        %v463 = vpack.c.b16 %v432, %v431
        %v464 = vpack.c.b16 %v434, %v433
        %v465 = vpack.c.b16 %v436, %v435
        %v466 = vpack.c.b16 %v438, %v437
        %v467 = vpack.c.b16 %v440, %v439
        %v468 = vpack.c.b16 %v442, %v441
        %v469 = vpack.c.b16 %v444, %v443
        %v470 = vpack.c.b16 %v446, %v445
        %v471 = vpack.c.b16 %v448, %v447
        %v472 = vpack.c.b16 %v450, %v449
        %v473 = vpack.c.b16 %v452, %v451
        %v474 = vpack.c.b16 %v454, %v453
        %v475 = vpack.c.b16 %v456, %v455
        %v476 = vpack.c.b16 %v458, %v457
        %v477 = vpack.c.b16 %v460, %v459
        %v478 = vpack.c.b16 %v462, %v461
        %v511 = vunpack.c.l.b16 %v376
        %v512 = vunpack.c.l.b16 %v377
        %v513 = vunpack.c.l.b16 %v378
        %v514 = vunpack.c.l.b16 %v379
        %v515 = vunpack.c.l.b16 %v380
        %v516 = vunpack.c.l.b16 %v381
        %v517 = vunpack.c.l.b16 %v382
        %v518 = vunpack.c.l.b16 %v383
        %v519 = vunpack.c.l.b16 %v384
        %v520 = vunpack.c.l.b16 %v385
        %v521 = vunpack.c.l.b16 %v386
        %v522 = vunpack.c.l.b16 %v387
        %v523 = vunpack.c.l.b16 %v388
        %v524 = vunpack.c.l.b16 %v389
        %v525 = vunpack.c.l.b16 %v390
        %v526 = vunpack.c.l.b16 %v391
        %v527 = vpack.c.b16 %v512, %v511
        %v528 = vpack.c.b16 %v514, %v513
        %v529 = vpack.c.b16 %v516, %v515
        %v530 = vpack.c.b16 %v518, %v517
        %v531 = vpack.c.b16 %v520, %v519
        %v532 = vpack.c.b16 %v522, %v521
        %v533 = vpack.c.b16 %v524, %v523
        %v534 = vpack.c.b16 %v526, %v525
        %543 = vmatprep.subr.bf16.mxu0 0
        %544 = vmatpush1.bf16.msra.mxu0 %v534
        %545 = vmatprep.subr.bf16.mxu0 0
        %546 = vmatpush1.bf16.msra.mxu0 %v533
        %547 = vmatprep.subr.bf16.mxu0 0
        %548 = vmatpush1.bf16.msra.mxu0 %v532
        %549 = vmatprep.subr.bf16.mxu0 0
        %550 = vmatpush1.bf16.msra.mxu0 %v531
        %551 = vmatprep.subr.bf16.mxu0 0
        %552 = vmatpush1.bf16.msra.mxu0 %v530
        %553 = vmatprep.subr.bf16.mxu0 0
        %554 = vmatpush1.bf16.msra.mxu0 %v529
        %555 = vmatprep.subr.bf16.mxu0 0
        %556 = vmatpush1.bf16.msra.mxu0 %v528
        %557 = vmatprep.subr.bf16.mxu0 0
        %558 = vmatpush1.bf16.msra.mxu0 %v527
        %559 = vmatprep.subr.bf16.mxu0 0
        %560 = vmatpush2.bf16.msra.mxu0 0
        %561 = vmatprep.subr.bf16.mxu0 0
        %562 = vmatpush2.bf16.msra.mxu0 0
        %563 = vmatprep.subr.bf16.mxu0 0
        %564 = vmatpush2.bf16.msra.mxu0 0
        %565 = vmatprep.subr.bf16.mxu0 0
        %566 = vmatpush2.bf16.msra.mxu0 0
        %567 = vmatprep.subr.bf16.mxu0 0
        %568 = vmatpush2.bf16.msra.mxu0 0
        %569 = vmatprep.subr.bf16.mxu0 0
        %570 = vmatpush2.bf16.msra.mxu0 0
        %571 = vmatprep.subr.bf16.mxu0 0
        %572 = vmatpush2.bf16.msra.mxu0 0
        %573 = vmatprep.subr.bf16.mxu0 0
        %574 = vmatpush2.bf16.msra.mxu0 0
        %575 = vmatprep.mubr.bf16.mxu0 0
        %576 = vmatmul.mubr.bf16.gmra.mxu0 %v463
        %v577 = vpop.f32.mrf.mxu0
        %v578 = vadd.f32 %v397, %v577
        %v579 = vpop.f32.mrf.mxu0
        %v580 = vpop.f32.mrf.mxu0
        %v581 = vadd.f32 %v397, %v580
        %v582 = vpop.f32.mrf.mxu0
        %583 = vmatprep.mubr.bf16.mxu0 0
        %584 = vmatmul.mubr.bf16.gmra.mxu0 %v464
        %v585 = vpop.f32.mrf.mxu0
        %v586 = vadd.f32 %v397, %v585
        %v587 = vpop.f32.mrf.mxu0
        %v588 = vpop.f32.mrf.mxu0
        %v589 = vadd.f32 %v397, %v588
        %v590 = vpop.f32.mrf.mxu0
        %591 = vmatprep.mubr.bf16.mxu0 0
        %592 = vmatmul.mubr.bf16.gmra.mxu0 %v465
        %v593 = vpop.f32.mrf.mxu0
        %v594 = vadd.f32 %v397, %v593
        %v595 = vpop.f32.mrf.mxu0
        %v596 = vpop.f32.mrf.mxu0
        %v597 = vadd.f32 %v397, %v596
        %v598 = vpop.f32.mrf.mxu0
        %599 = vmatprep.mubr.bf16.mxu0 0
        %600 = vmatmul.mubr.bf16.gmra.mxu0 %v466
        %v601 = vpop.f32.mrf.mxu0
        %v602 = vadd.f32 %v397, %v601
        %v603 = vpop.f32.mrf.mxu0
        %v604 = vpop.f32.mrf.mxu0
        %v605 = vadd.f32 %v397, %v604
        %v606 = vpop.f32.mrf.mxu0
        %607 = vmatprep.mubr.bf16.mxu0 0
        %608 = vmatmul.mubr.bf16.gmra.mxu0 %v467
        %v609 = vpop.f32.mrf.mxu0
        %v610 = vadd.f32 %v397, %v609
        %v611 = vpop.f32.mrf.mxu0
        %v612 = vpop.f32.mrf.mxu0
        %v613 = vadd.f32 %v397, %v612
        %v614 = vpop.f32.mrf.mxu0
        %615 = vmatprep.mubr.bf16.mxu0 0
        %616 = vmatmul.mubr.bf16.gmra.mxu0 %v468
        %v617 = vpop.f32.mrf.mxu0
        %v618 = vadd.f32 %v397, %v617
        %v619 = vpop.f32.mrf.mxu0
        %v620 = vpop.f32.mrf.mxu0
        %v621 = vadd.f32 %v397, %v620
        %v622 = vpop.f32.mrf.mxu0
        %623 = vmatprep.mubr.bf16.mxu0 0
        %624 = vmatmul.mubr.bf16.gmra.mxu0 %v469
        %v625 = vpop.f32.mrf.mxu0
        %v626 = vadd.f32 %v397, %v625
        %v627 = vpop.f32.mrf.mxu0
        %v628 = vpop.f32.mrf.mxu0
        %v629 = vadd.f32 %v397, %v628
        %v630 = vpop.f32.mrf.mxu0
        %631 = vmatprep.mubr.bf16.mxu0 0
        %632 = vmatmul.mubr.bf16.gmra.mxu0 %v470
        %v633 = vpop.f32.mrf.mxu0
        %v634 = vadd.f32 %v397, %v633
        %v635 = vpop.f32.mrf.mxu0
        %v636 = vpop.f32.mrf.mxu0
        %v637 = vadd.f32 %v397, %v636
        %v638 = vpop.f32.mrf.mxu0
        %639 = vmatprep.mubr.bf16.mxu0 0
        %640 = vmatmul.mubr.bf16.gmra.mxu0 %v471
        %v641 = vpop.f32.mrf.mxu0
        %v642 = vadd.f32 %v397, %v641
        %v643 = vpop.f32.mrf.mxu0
        %v644 = vpop.f32.mrf.mxu0
        %v645 = vadd.f32 %v397, %v644
        %v646 = vpop.f32.mrf.mxu0
        %647 = vmatprep.mubr.bf16.mxu0 0
        %648 = vmatmul.mubr.bf16.gmra.mxu0 %v472
        %v649 = vpop.f32.mrf.mxu0
        %v650 = vadd.f32 %v397, %v649
        %v651 = vpop.f32.mrf.mxu0
        %v652 = vpop.f32.mrf.mxu0
        %v653 = vadd.f32 %v397, %v652
        %v654 = vpop.f32.mrf.mxu0
        %655 = vmatprep.mubr.bf16.mxu0 0
        %656 = vmatmul.mubr.bf16.gmra.mxu0 %v473
        %v657 = vpop.f32.mrf.mxu0
        %v658 = vadd.f32 %v397, %v657
        %v659 = vpop.f32.mrf.mxu0
        %v660 = vpop.f32.mrf.mxu0
        %v661 = vadd.f32 %v397, %v660
        %v662 = vpop.f32.mrf.mxu0
        %663 = vmatprep.mubr.bf16.mxu0 0
        %664 = vmatmul.mubr.bf16.gmra.mxu0 %v474
        %v665 = vpop.f32.mrf.mxu0
        %v666 = vadd.f32 %v397, %v665
        %v667 = vpop.f32.mrf.mxu0
        %v668 = vpop.f32.mrf.mxu0
        %v669 = vadd.f32 %v397, %v668
        %v670 = vpop.f32.mrf.mxu0
        %671 = vmatprep.mubr.bf16.mxu0 0
        %672 = vmatmul.mubr.bf16.gmra.mxu0 %v475
        %v673 = vpop.f32.mrf.mxu0
        %v674 = vadd.f32 %v397, %v673
        %v675 = vpop.f32.mrf.mxu0
        %v676 = vpop.f32.mrf.mxu0
        %v677 = vadd.f32 %v397, %v676
        %v678 = vpop.f32.mrf.mxu0
        %679 = vmatprep.mubr.bf16.mxu0 0
        %680 = vmatmul.mubr.bf16.gmra.mxu0 %v476
        %v681 = vpop.f32.mrf.mxu0
        %v682 = vadd.f32 %v397, %v681
        %v683 = vpop.f32.mrf.mxu0
        %v684 = vpop.f32.mrf.mxu0
        %v685 = vadd.f32 %v397, %v684
        %v686 = vpop.f32.mrf.mxu0
        %687 = vmatprep.mubr.bf16.mxu0 0
        %688 = vmatmul.mubr.bf16.gmra.mxu0 %v477
        %v689 = vpop.f32.mrf.mxu0
        %v690 = vadd.f32 %v397, %v689
        %v691 = vpop.f32.mrf.mxu0
        %v692 = vpop.f32.mrf.mxu0
        %v693 = vadd.f32 %v397, %v692
        %v694 = vpop.f32.mrf.mxu0
        %695 = vmatprep.mubr.bf16.mxu0 0
        %696 = vmatmul.mubr.bf16.gmra.mxu0 %v478
        %v697 = vpop.f32.mrf.mxu0
        %v698 = vadd.f32 %v397, %v697
        %v699 = vpop.f32.mrf.mxu0
        %v700 = vpop.f32.mrf.mxu0
        %v701 = vadd.f32 %v397, %v700
        %v702 = vpop.f32.mrf.mxu0
        %703 = vdwg.mxu0
        %v704 = vxor.u32 %v578, 2147483648
        %v705 = vxor.u32 %v581, 2147483648
        %v706 = vxor.u32 %v586, 2147483648
        %v707 = vxor.u32 %v589, 2147483648
        %v708 = vxor.u32 %v594, 2147483648
        %v709 = vxor.u32 %v597, 2147483648
        %v710 = vxor.u32 %v602, 2147483648
        %v711 = vxor.u32 %v605, 2147483648
        %v712 = vxor.u32 %v610, 2147483648
        %v713 = vxor.u32 %v613, 2147483648
        %v714 = vxor.u32 %v618, 2147483648
        %v715 = vxor.u32 %v621, 2147483648
        %v716 = vxor.u32 %v626, 2147483648
        %v717 = vxor.u32 %v629, 2147483648
        %v718 = vxor.u32 %v634, 2147483648
        %v719 = vxor.u32 %v637, 2147483648
        %v720 = vxor.u32 %v642, 2147483648
        %v721 = vxor.u32 %v645, 2147483648
        %v722 = vxor.u32 %v650, 2147483648
        %v723 = vxor.u32 %v653, 2147483648
        %v724 = vxor.u32 %v658, 2147483648
        %v725 = vxor.u32 %v661, 2147483648
        %v726 = vxor.u32 %v666, 2147483648
        %v727 = vxor.u32 %v669, 2147483648
        %v728 = vxor.u32 %v674, 2147483648
        %v729 = vxor.u32 %v677, 2147483648
        %v730 = vxor.u32 %v682, 2147483648
        %v731 = vxor.u32 %v685, 2147483648
        %v732 = vxor.u32 %v690, 2147483648
        %v733 = vxor.u32 %v693, 2147483648
        %v734 = vxor.u32 %v698, 2147483648
        %v735 = vxor.u32 %v701, 2147483648
        %v736 = vmul.f32 %v704, 1.442695
        %v737 = vpow.pop %v736
        %v738 = vmul.f32 %v705, 1.442695
        %v739 = vpow.pop %v738
        %v740 = vmul.f32 %v706, 1.442695
        %v741 = vpow.pop %v740
        %v742 = vmul.f32 %v707, 1.442695
        %v743 = vpow.pop %v742
        %v744 = vmul.f32 %v708, 1.442695
        %v745 = vpow.pop %v744
        %v746 = vmul.f32 %v709, 1.442695
        %v747 = vpow.pop %v746
        %v748 = vmul.f32 %v710, 1.442695
        %v749 = vpow.pop %v748
        %v750 = vmul.f32 %v711, 1.442695
        %v751 = vpow.pop %v750
        %v752 = vmul.f32 %v712, 1.442695
        %v753 = vpow.pop %v752
        %v754 = vmul.f32 %v713, 1.442695
        %v755 = vpow.pop %v754
        %v756 = vmul.f32 %v714, 1.442695
        %v757 = vpow.pop %v756
        %v758 = vmul.f32 %v715, 1.442695
        %v759 = vpow.pop %v758
        %v760 = vmul.f32 %v716, 1.442695
        %v761 = vpow.pop %v760
        %v762 = vmul.f32 %v717, 1.442695
        %v763 = vpow.pop %v762
        %v764 = vmul.f32 %v718, 1.442695
        %v765 = vpow.pop %v764
        %v766 = vmul.f32 %v719, 1.442695
        %v767 = vpow.pop %v766
        %v768 = vmul.f32 %v720, 1.442695
        %v769 = vpow.pop %v768
        %v770 = vmul.f32 %v721, 1.442695
        %v771 = vpow.pop %v770
        %v772 = vmul.f32 %v722, 1.442695
        %v773 = vpow.pop %v772
        %v774 = vmul.f32 %v723, 1.442695
        %v775 = vpow.pop %v774
        %v776 = vmul.f32 %v724, 1.442695
        %v777 = vpow.pop %v776
        %v778 = vmul.f32 %v725, 1.442695
        %v779 = vpow.pop %v778
        %v780 = vmul.f32 %v726, 1.442695
        %v781 = vpow.pop %v780
        %v782 = vmul.f32 %v727, 1.442695
        %v783 = vpow.pop %v782
        %v784 = vmul.f32 %v728, 1.442695
        %v785 = vpow.pop %v784
        %v786 = vmul.f32 %v729, 1.442695
        %v787 = vpow.pop %v786
        %v788 = vmul.f32 %v730, 1.442695
        %v789 = vpow.pop %v788
        %v790 = vmul.f32 %v731, 1.442695
        %v791 = vpow.pop %v790
        %v792 = vmul.f32 %v732, 1.442695
        %v793 = vpow.pop %v792
        %v794 = vmul.f32 %v733, 1.442695
        %v795 = vpow.pop %v794
        %v796 = vmul.f32 %v734, 1.442695
        %v797 = vpow.pop %v796
        %v798 = vmul.f32 %v735, 1.442695
        %v799 = vpow.pop %v798
        %v800 = vadd.f32 %v737, 1.0
        %v801 = vadd.f32 %v739, 1.0
        %v802 = vadd.f32 %v741, 1.0
        %v803 = vadd.f32 %v743, 1.0
        %v804 = vadd.f32 %v745, 1.0
        %v805 = vadd.f32 %v747, 1.0
        %v806 = vadd.f32 %v749, 1.0
        %v807 = vadd.f32 %v751, 1.0
        %v808 = vadd.f32 %v753, 1.0
        %v809 = vadd.f32 %v755, 1.0
        %v810 = vadd.f32 %v757, 1.0
        %v811 = vadd.f32 %v759, 1.0
        %v812 = vadd.f32 %v761, 1.0
        %v813 = vadd.f32 %v763, 1.0
        %v814 = vadd.f32 %v765, 1.0
        %v815 = vadd.f32 %v767, 1.0
        %v816 = vadd.f32 %v769, 1.0
        %v817 = vadd.f32 %v771, 1.0
        %v818 = vadd.f32 %v773, 1.0
        %v819 = vadd.f32 %v775, 1.0
        %v820 = vadd.f32 %v777, 1.0
        %v821 = vadd.f32 %v779, 1.0
        %v822 = vadd.f32 %v781, 1.0
        %v823 = vadd.f32 %v783, 1.0
        %v824 = vadd.f32 %v785, 1.0
        %v825 = vadd.f32 %v787, 1.0
        %v826 = vadd.f32 %v789, 1.0
        %v827 = vadd.f32 %v791, 1.0
        %v828 = vadd.f32 %v793, 1.0
        %v829 = vadd.f32 %v795, 1.0
        %v830 = vadd.f32 %v797, 1.0
        %v831 = vadd.f32 %v799, 1.0
        %v832 = vrcp.pop %v800
        %v833 = vmul.f32 1.0, %v832
        %v834 = vrcp.pop %v801
        %v835 = vmul.f32 1.0, %v834
        %v836 = vrcp.pop %v802
        %v837 = vmul.f32 1.0, %v836
        %v838 = vrcp.pop %v803
        %v839 = vmul.f32 1.0, %v838
        %v840 = vrcp.pop %v804
        %v841 = vmul.f32 1.0, %v840
        %v842 = vrcp.pop %v805
        %v843 = vmul.f32 1.0, %v842
        %v844 = vrcp.pop %v806
        %v845 = vmul.f32 1.0, %v844
        %v846 = vrcp.pop %v807
        %v847 = vmul.f32 1.0, %v846
        %v848 = vrcp.pop %v808
        %v849 = vmul.f32 1.0, %v848
        %v850 = vrcp.pop %v809
        %v851 = vmul.f32 1.0, %v850
        %v852 = vrcp.pop %v810
        %v853 = vmul.f32 1.0, %v852
        %v854 = vrcp.pop %v811
        %v855 = vmul.f32 1.0, %v854
        %v856 = vrcp.pop %v812
        %v857 = vmul.f32 1.0, %v856
        %v858 = vrcp.pop %v813
        %v859 = vmul.f32 1.0, %v858
        %v860 = vrcp.pop %v814
        %v861 = vmul.f32 1.0, %v860
        %v862 = vrcp.pop %v815
        %v863 = vmul.f32 1.0, %v862
        %v864 = vrcp.pop %v816
        %v865 = vmul.f32 1.0, %v864
        %v866 = vrcp.pop %v817
        %v867 = vmul.f32 1.0, %v866
        %v868 = vrcp.pop %v818
        %v869 = vmul.f32 1.0, %v868
        %v870 = vrcp.pop %v819
        %v871 = vmul.f32 1.0, %v870
        %v872 = vrcp.pop %v820
        %v873 = vmul.f32 1.0, %v872
        %v874 = vrcp.pop %v821
        %v875 = vmul.f32 1.0, %v874
        %v876 = vrcp.pop %v822
        %v877 = vmul.f32 1.0, %v876
        %v878 = vrcp.pop %v823
        %v879 = vmul.f32 1.0, %v878
        %v880 = vrcp.pop %v824
        %v881 = vmul.f32 1.0, %v880
        %v882 = vrcp.pop %v825
        %v883 = vmul.f32 1.0, %v882
        %v884 = vrcp.pop %v826
        %v885 = vmul.f32 1.0, %v884
        %v886 = vrcp.pop %v827
        %v887 = vmul.f32 1.0, %v886
        %v888 = vrcp.pop %v828
        %v889 = vmul.f32 1.0, %v888
        %v890 = vrcp.pop %v829
        %v891 = vmul.f32 1.0, %v890
        %v892 = vrcp.pop %v830
        %v893 = vmul.f32 1.0, %v892
        %v894 = vrcp.pop %v831
        %v895 = vmul.f32 1.0, %v894
        %v896 = vmul.f32 %v578, %v833
        %v897 = vmul.f32 %v581, %v835
        %v898 = vmul.f32 %v586, %v837
        %v899 = vmul.f32 %v589, %v839
        %v900 = vmul.f32 %v594, %v841
        %v901 = vmul.f32 %v597, %v843
        %v902 = vmul.f32 %v602, %v845
        %v903 = vmul.f32 %v605, %v847
        %v904 = vmul.f32 %v610, %v849
        %v905 = vmul.f32 %v613, %v851
        %v906 = vmul.f32 %v618, %v853
        %v907 = vmul.f32 %v621, %v855
        %v908 = vmul.f32 %v626, %v857
        %v909 = vmul.f32 %v629, %v859
        %v910 = vmul.f32 %v634, %v861
        %v911 = vmul.f32 %v637, %v863
        %v912 = vmul.f32 %v642, %v865
        %v913 = vmul.f32 %v645, %v867
        %v914 = vmul.f32 %v650, %v869
        %v915 = vmul.f32 %v653, %v871
        %v916 = vmul.f32 %v658, %v873
        %v917 = vmul.f32 %v661, %v875
        %v918 = vmul.f32 %v666, %v877
        %v919 = vmul.f32 %v669, %v879
        %v920 = vmul.f32 %v674, %v881
        %v921 = vmul.f32 %v677, %v883
        %v922 = vmul.f32 %v682, %v885
        %v923 = vmul.f32 %v685, %v887
        %v924 = vmul.f32 %v690, %v889
        %v925 = vmul.f32 %v693, %v891
        %v926 = vmul.f32 %v698, %v893
        %v927 = vmul.f32 %v701, %v895
        %v928 = vld [vmem:[#allocation7] sm:$0xf]
        %v929 = vld [vmem:[#allocation7 + $0x4] sm:$0xf]
        %v930 = vld [vmem:[#allocation7 + $0x8] sm:$0xf]
        %v931 = vld [vmem:[#allocation7 + $0xc] sm:$0xf]
        %v932 = vld [vmem:[#allocation7 + $0x10] sm:$0xf]
        %v933 = vld [vmem:[#allocation7 + $0x14] sm:$0xf]
        %v934 = vld [vmem:[#allocation7 + $0x18] sm:$0xf]
        %v935 = vld [vmem:[#allocation7 + $0x1c] sm:$0xf]
        %v936 = vld [vmem:[#allocation7 + $0x20] sm:$0xf]
        %v937 = vld [vmem:[#allocation7 + $0x24] sm:$0xf]
        %v938 = vld [vmem:[#allocation7 + $0x28] sm:$0xf]
        %v939 = vld [vmem:[#allocation7 + $0x2c] sm:$0xf]
        %v940 = vld [vmem:[#allocation7 + $0x30] sm:$0xf]
        %v941 = vld [vmem:[#allocation7 + $0x34] sm:$0xf]
        %v942 = vld [vmem:[#allocation7 + $0x38] sm:$0xf]
        %v943 = vld [vmem:[#allocation7 + $0x3c] sm:$0xf]
        %v944 = vld [vmem:[%s4] sm:$0x1]
        %v945 = vpack.c.bf16 %v897, %v896
        %v946 = vpack.c.bf16 %v899, %v898
        %v947 = vpack.c.bf16 %v901, %v900
        %v948 = vpack.c.bf16 %v903, %v902
        %v949 = vpack.c.bf16 %v905, %v904
        %v950 = vpack.c.bf16 %v907, %v906
        %v951 = vpack.c.bf16 %v909, %v908
        %v952 = vpack.c.bf16 %v911, %v910
        %v953 = vpack.c.bf16 %v913, %v912
        %v954 = vpack.c.bf16 %v915, %v914
        %v955 = vpack.c.bf16 %v917, %v916
        %v956 = vpack.c.bf16 %v919, %v918
        %v957 = vpack.c.bf16 %v921, %v920
        %v958 = vpack.c.bf16 %v923, %v922
        %v959 = vpack.c.bf16 %v925, %v924
        %v960 = vpack.c.bf16 %v927, %v926
        %v962 = vlaneseq
        %v963 = vshrl.u32 %v962, 7
        %v964 = vsub.s32 0, %v963
        %v965 = vrot.slane %v944, %v964
        %v983 = vunpack.c.l.b16 %v928
        %v984 = vunpack.c.l.b16 %v929
        %v985 = vunpack.c.l.b16 %v930
        %v986 = vunpack.c.l.b16 %v931
        %v987 = vunpack.c.l.b16 %v932
        %v988 = vunpack.c.l.b16 %v933
        %v989 = vunpack.c.l.b16 %v934
        %v990 = vunpack.c.l.b16 %v935
        %v991 = vunpack.c.l.b16 %v936
        %v992 = vunpack.c.l.b16 %v937
        %v993 = vunpack.c.l.b16 %v938
        %v994 = vunpack.c.l.b16 %v939
        %v995 = vunpack.c.l.b16 %v940
        %v996 = vunpack.c.l.b16 %v941
        %v997 = vunpack.c.l.b16 %v942
        %v998 = vunpack.c.l.b16 %v943
        %v999 = vpack.c.b16 %v984, %v983
        %v1000 = vpack.c.b16 %v986, %v985
        %v1001 = vpack.c.b16 %v988, %v987
        %v1002 = vpack.c.b16 %v990, %v989
        %v1003 = vpack.c.b16 %v992, %v991
        %v1004 = vpack.c.b16 %v994, %v993
        %v1005 = vpack.c.b16 %v996, %v995
        %v1006 = vpack.c.b16 %v998, %v997
        %1015 = vmatprep.subr.bf16.mxu0 0
        %1016 = vmatpush1.bf16.msra.mxu0 %v1006
        %1017 = vmatprep.subr.bf16.mxu0 0
        %1018 = vmatpush1.bf16.msra.mxu0 %v1005
        %1019 = vmatprep.subr.bf16.mxu0 0
        %1020 = vmatpush1.bf16.msra.mxu0 %v1004
        %1021 = vmatprep.subr.bf16.mxu0 0
        %1022 = vmatpush1.bf16.msra.mxu0 %v1003
        %1023 = vmatprep.subr.bf16.mxu0 0
        %1024 = vmatpush1.bf16.msra.mxu0 %v1002
        %1025 = vmatprep.subr.bf16.mxu0 0
        %1026 = vmatpush1.bf16.msra.mxu0 %v1001
        %1027 = vmatprep.subr.bf16.mxu0 0
        %1028 = vmatpush1.bf16.msra.mxu0 %v1000
        %1029 = vmatprep.subr.bf16.mxu0 0
        %1030 = vmatpush1.bf16.msra.mxu0 %v999
        %1031 = vmatprep.subr.bf16.mxu0 0
        %1032 = vmatpush2.bf16.msra.mxu0 0
        %1033 = vmatprep.subr.bf16.mxu0 0
        %1034 = vmatpush2.bf16.msra.mxu0 0
        %1035 = vmatprep.subr.bf16.mxu0 0
        %1036 = vmatpush2.bf16.msra.mxu0 0
        %1037 = vmatprep.subr.bf16.mxu0 0
        %1038 = vmatpush2.bf16.msra.mxu0 0
        %1039 = vmatprep.subr.bf16.mxu0 0
        %1040 = vmatpush2.bf16.msra.mxu0 0
        %1041 = vmatprep.subr.bf16.mxu0 0
        %1042 = vmatpush2.bf16.msra.mxu0 0
        %1043 = vmatprep.subr.bf16.mxu0 0
        %1044 = vmatpush2.bf16.msra.mxu0 0
        %1045 = vmatprep.subr.bf16.mxu0 0
        %1046 = vmatpush2.bf16.msra.mxu0 0
        %1047 = vmatprep.mubr.bf16.mxu0 0
        %1048 = vmatmul.mubr.bf16.gmra.mxu0 %v945
        %v1049 = vpop.f32.mrf.mxu0
        %v1050 = vadd.f32 %v965, %v1049
        %v1051 = vpop.f32.mrf.mxu0
        %v1052 = vpop.f32.mrf.mxu0
        %v1053 = vadd.f32 %v965, %v1052
        %v1054 = vpop.f32.mrf.mxu0
        %1055 = vmatprep.mubr.bf16.mxu0 0
        %1056 = vmatmul.mubr.bf16.gmra.mxu0 %v946
        %v1057 = vpop.f32.mrf.mxu0
        %v1058 = vadd.f32 %v965, %v1057
        %v1059 = vpop.f32.mrf.mxu0
        %v1060 = vpop.f32.mrf.mxu0
        %v1061 = vadd.f32 %v965, %v1060
        %v1062 = vpop.f32.mrf.mxu0
        %1063 = vmatprep.mubr.bf16.mxu0 0
        %1064 = vmatmul.mubr.bf16.gmra.mxu0 %v947
        %v1065 = vpop.f32.mrf.mxu0
        %v1066 = vadd.f32 %v965, %v1065
        %v1067 = vpop.f32.mrf.mxu0
        %v1068 = vpop.f32.mrf.mxu0
        %v1069 = vadd.f32 %v965, %v1068
        %v1070 = vpop.f32.mrf.mxu0
        %1071 = vmatprep.mubr.bf16.mxu0 0
        %1072 = vmatmul.mubr.bf16.gmra.mxu0 %v948
        %v1073 = vpop.f32.mrf.mxu0
        %v1074 = vadd.f32 %v965, %v1073
        %v1075 = vpop.f32.mrf.mxu0
        %v1076 = vpop.f32.mrf.mxu0
        %v1077 = vadd.f32 %v965, %v1076
        %v1078 = vpop.f32.mrf.mxu0
        %1079 = vmatprep.mubr.bf16.mxu0 0
        %1080 = vmatmul.mubr.bf16.gmra.mxu0 %v949
        %v1081 = vpop.f32.mrf.mxu0
        %v1082 = vadd.f32 %v965, %v1081
        %v1083 = vpop.f32.mrf.mxu0
        %v1084 = vpop.f32.mrf.mxu0
        %v1085 = vadd.f32 %v965, %v1084
        %v1086 = vpop.f32.mrf.mxu0
        %1087 = vmatprep.mubr.bf16.mxu0 0
        %1088 = vmatmul.mubr.bf16.gmra.mxu0 %v950
        %v1089 = vpop.f32.mrf.mxu0
        %v1090 = vadd.f32 %v965, %v1089
        %v1091 = vpop.f32.mrf.mxu0
        %v1092 = vpop.f32.mrf.mxu0
        %v1093 = vadd.f32 %v965, %v1092
        %v1094 = vpop.f32.mrf.mxu0
        %1095 = vmatprep.mubr.bf16.mxu0 0
        %1096 = vmatmul.mubr.bf16.gmra.mxu0 %v951
        %v1097 = vpop.f32.mrf.mxu0
        %v1098 = vadd.f32 %v965, %v1097
        %v1099 = vpop.f32.mrf.mxu0
        %v1100 = vpop.f32.mrf.mxu0
        %v1101 = vadd.f32 %v965, %v1100
        %v1102 = vpop.f32.mrf.mxu0
        %1103 = vmatprep.mubr.bf16.mxu0 0
        %1104 = vmatmul.mubr.bf16.gmra.mxu0 %v952
        %v1105 = vpop.f32.mrf.mxu0
        %v1106 = vadd.f32 %v965, %v1105
        %v1107 = vpop.f32.mrf.mxu0
        %v1108 = vpop.f32.mrf.mxu0
        %v1109 = vadd.f32 %v965, %v1108
        %v1110 = vpop.f32.mrf.mxu0
        %1111 = vmatprep.mubr.bf16.mxu0 0
        %1112 = vmatmul.mubr.bf16.gmra.mxu0 %v953
        %v1113 = vpop.f32.mrf.mxu0
        %v1114 = vadd.f32 %v965, %v1113
        %v1115 = vpop.f32.mrf.mxu0
        %v1116 = vpop.f32.mrf.mxu0
        %v1117 = vadd.f32 %v965, %v1116
        %v1118 = vpop.f32.mrf.mxu0
        %1119 = vmatprep.mubr.bf16.mxu0 0
        %1120 = vmatmul.mubr.bf16.gmra.mxu0 %v954
        %v1121 = vpop.f32.mrf.mxu0
        %v1122 = vadd.f32 %v965, %v1121
        %v1123 = vpop.f32.mrf.mxu0
        %v1124 = vpop.f32.mrf.mxu0
        %v1125 = vadd.f32 %v965, %v1124
        %v1126 = vpop.f32.mrf.mxu0
        %1127 = vmatprep.mubr.bf16.mxu0 0
        %1128 = vmatmul.mubr.bf16.gmra.mxu0 %v955
        %v1129 = vpop.f32.mrf.mxu0
        %v1130 = vadd.f32 %v965, %v1129
        %v1131 = vpop.f32.mrf.mxu0
        %v1132 = vpop.f32.mrf.mxu0
        %v1133 = vadd.f32 %v965, %v1132
        %v1134 = vpop.f32.mrf.mxu0
        %1135 = vmatprep.mubr.bf16.mxu0 0
        %1136 = vmatmul.mubr.bf16.gmra.mxu0 %v956
        %v1137 = vpop.f32.mrf.mxu0
        %v1138 = vadd.f32 %v965, %v1137
        %v1139 = vpop.f32.mrf.mxu0
        %v1140 = vpop.f32.mrf.mxu0
        %v1141 = vadd.f32 %v965, %v1140
        %v1142 = vpop.f32.mrf.mxu0
        %1143 = vmatprep.mubr.bf16.mxu0 0
        %1144 = vmatmul.mubr.bf16.gmra.mxu0 %v957
        %v1145 = vpop.f32.mrf.mxu0
        %v1146 = vadd.f32 %v965, %v1145
        %v1147 = vpop.f32.mrf.mxu0
        %v1148 = vpop.f32.mrf.mxu0
        %v1149 = vadd.f32 %v965, %v1148
        %v1150 = vpop.f32.mrf.mxu0
        %1151 = vmatprep.mubr.bf16.mxu0 0
        %1152 = vmatmul.mubr.bf16.gmra.mxu0 %v958
        %v1153 = vpop.f32.mrf.mxu0
        %v1154 = vadd.f32 %v965, %v1153
        %v1155 = vpop.f32.mrf.mxu0
        %v1156 = vpop.f32.mrf.mxu0
        %v1157 = vadd.f32 %v965, %v1156
        %v1158 = vpop.f32.mrf.mxu0
        %1159 = vmatprep.mubr.bf16.mxu0 0
        %1160 = vmatmul.mubr.bf16.gmra.mxu0 %v959
        %v1161 = vpop.f32.mrf.mxu0
        %v1162 = vadd.f32 %v965, %v1161
        %v1163 = vpop.f32.mrf.mxu0
        %v1164 = vpop.f32.mrf.mxu0
        %v1165 = vadd.f32 %v965, %v1164
        %v1166 = vpop.f32.mrf.mxu0
        %1167 = vmatprep.mubr.bf16.mxu0 0
        %1168 = vmatmul.mubr.bf16.gmra.mxu0 %v960
        %v1169 = vpop.f32.mrf.mxu0
        %v1170 = vadd.f32 %v965, %v1169
        %v1171 = vpop.f32.mrf.mxu0
        %v1172 = vpop.f32.mrf.mxu0
        %v1173 = vadd.f32 %v965, %v1172
        %v1174 = vpop.f32.mrf.mxu0
        %1175 = vdwg.mxu0
        %v1176 = vxor.u32 %v1050, 2147483648
        %v1177 = vxor.u32 %v1053, 2147483648
        %v1178 = vxor.u32 %v1058, 2147483648
        %v1179 = vxor.u32 %v1061, 2147483648
        %v1180 = vxor.u32 %v1066, 2147483648
        %v1181 = vxor.u32 %v1069, 2147483648
        %v1182 = vxor.u32 %v1074, 2147483648
        %v1183 = vxor.u32 %v1077, 2147483648
        %v1184 = vxor.u32 %v1082, 2147483648
        %v1185 = vxor.u32 %v1085, 2147483648
        %v1186 = vxor.u32 %v1090, 2147483648
        %v1187 = vxor.u32 %v1093, 2147483648
        %v1188 = vxor.u32 %v1098, 2147483648
        %v1189 = vxor.u32 %v1101, 2147483648
        %v1190 = vxor.u32 %v1106, 2147483648
        %v1191 = vxor.u32 %v1109, 2147483648
        %v1192 = vxor.u32 %v1114, 2147483648
        %v1193 = vxor.u32 %v1117, 2147483648
        %v1194 = vxor.u32 %v1122, 2147483648
        %v1195 = vxor.u32 %v1125, 2147483648
        %v1196 = vxor.u32 %v1130, 2147483648
        %v1197 = vxor.u32 %v1133, 2147483648
        %v1198 = vxor.u32 %v1138, 2147483648
        %v1199 = vxor.u32 %v1141, 2147483648
        %v1200 = vxor.u32 %v1146, 2147483648
        %v1201 = vxor.u32 %v1149, 2147483648
        %v1202 = vxor.u32 %v1154, 2147483648
        %v1203 = vxor.u32 %v1157, 2147483648
        %v1204 = vxor.u32 %v1162, 2147483648
        %v1205 = vxor.u32 %v1165, 2147483648
        %v1206 = vxor.u32 %v1170, 2147483648
        %v1207 = vxor.u32 %v1173, 2147483648
        %v1208 = vmul.f32 %v1176, 1.442695
        %v1209 = vpow.pop %v1208
        %v1210 = vmul.f32 %v1177, 1.442695
        %v1211 = vpow.pop %v1210
        %v1212 = vmul.f32 %v1178, 1.442695
        %v1213 = vpow.pop %v1212
        %v1214 = vmul.f32 %v1179, 1.442695
        %v1215 = vpow.pop %v1214
        %v1216 = vmul.f32 %v1180, 1.442695
        %v1217 = vpow.pop %v1216
        %v1218 = vmul.f32 %v1181, 1.442695
        %v1219 = vpow.pop %v1218
        %v1220 = vmul.f32 %v1182, 1.442695
        %v1221 = vpow.pop %v1220
        %v1222 = vmul.f32 %v1183, 1.442695
        %v1223 = vpow.pop %v1222
        %v1224 = vmul.f32 %v1184, 1.442695
        %v1225 = vpow.pop %v1224
        %v1226 = vmul.f32 %v1185, 1.442695
        %v1227 = vpow.pop %v1226
        %v1228 = vmul.f32 %v1186, 1.442695
        %v1229 = vpow.pop %v1228
        %v1230 = vmul.f32 %v1187, 1.442695
        %v1231 = vpow.pop %v1230
        %v1232 = vmul.f32 %v1188, 1.442695
        %v1233 = vpow.pop %v1232
        %v1234 = vmul.f32 %v1189, 1.442695
        %v1235 = vpow.pop %v1234
        %v1236 = vmul.f32 %v1190, 1.442695
        %v1237 = vpow.pop %v1236
        %v1238 = vmul.f32 %v1191, 1.442695
        %v1239 = vpow.pop %v1238
        %v1240 = vmul.f32 %v1192, 1.442695
        %v1241 = vpow.pop %v1240
        %v1242 = vmul.f32 %v1193, 1.442695
        %v1243 = vpow.pop %v1242
        %v1244 = vmul.f32 %v1194, 1.442695
        %v1245 = vpow.pop %v1244
        %v1246 = vmul.f32 %v1195, 1.442695
        %v1247 = vpow.pop %v1246
        %v1248 = vmul.f32 %v1196, 1.442695
        %v1249 = vpow.pop %v1248
        %v1250 = vmul.f32 %v1197, 1.442695
        %v1251 = vpow.pop %v1250
        %v1252 = vmul.f32 %v1198, 1.442695
        %v1253 = vpow.pop %v1252
        %v1254 = vmul.f32 %v1199, 1.442695
        %v1255 = vpow.pop %v1254
        %v1256 = vmul.f32 %v1200, 1.442695
        %v1257 = vpow.pop %v1256
        %v1258 = vmul.f32 %v1201, 1.442695
        %v1259 = vpow.pop %v1258
        %v1260 = vmul.f32 %v1202, 1.442695
        %v1261 = vpow.pop %v1260
        %v1262 = vmul.f32 %v1203, 1.442695
        %v1263 = vpow.pop %v1262
        %v1264 = vmul.f32 %v1204, 1.442695
        %v1265 = vpow.pop %v1264
        %v1266 = vmul.f32 %v1205, 1.442695
        %v1267 = vpow.pop %v1266
        %v1268 = vmul.f32 %v1206, 1.442695
        %v1269 = vpow.pop %v1268
        %v1270 = vmul.f32 %v1207, 1.442695
        %v1271 = vpow.pop %v1270
        %v1272 = vadd.f32 %v1209, 1.0
        %v1273 = vadd.f32 %v1211, 1.0
        %v1274 = vadd.f32 %v1213, 1.0
        %v1275 = vadd.f32 %v1215, 1.0
        %v1276 = vadd.f32 %v1217, 1.0
        %v1277 = vadd.f32 %v1219, 1.0
        %v1278 = vadd.f32 %v1221, 1.0
        %v1279 = vadd.f32 %v1223, 1.0
        %v1280 = vadd.f32 %v1225, 1.0
        %v1281 = vadd.f32 %v1227, 1.0
        %v1282 = vadd.f32 %v1229, 1.0
        %v1283 = vadd.f32 %v1231, 1.0
        %v1284 = vadd.f32 %v1233, 1.0
        %v1285 = vadd.f32 %v1235, 1.0
        %v1286 = vadd.f32 %v1237, 1.0
        %v1287 = vadd.f32 %v1239, 1.0
        %v1288 = vadd.f32 %v1241, 1.0
        %v1289 = vadd.f32 %v1243, 1.0
        %v1290 = vadd.f32 %v1245, 1.0
        %v1291 = vadd.f32 %v1247, 1.0
        %v1292 = vadd.f32 %v1249, 1.0
        %v1293 = vadd.f32 %v1251, 1.0
        %v1294 = vadd.f32 %v1253, 1.0
        %v1295 = vadd.f32 %v1255, 1.0
        %v1296 = vadd.f32 %v1257, 1.0
        %v1297 = vadd.f32 %v1259, 1.0
        %v1298 = vadd.f32 %v1261, 1.0
        %v1299 = vadd.f32 %v1263, 1.0
        %v1300 = vadd.f32 %v1265, 1.0
        %v1301 = vadd.f32 %v1267, 1.0
        %v1302 = vadd.f32 %v1269, 1.0
        %v1303 = vadd.f32 %v1271, 1.0
        %v1304 = vrcp.pop %v1272
        %v1305 = vmul.f32 1.0, %v1304
        %v1306 = vrcp.pop %v1273
        %v1307 = vmul.f32 1.0, %v1306
        %v1308 = vrcp.pop %v1274
        %v1309 = vmul.f32 1.0, %v1308
        %v1310 = vrcp.pop %v1275
        %v1311 = vmul.f32 1.0, %v1310
        %v1312 = vrcp.pop %v1276
        %v1313 = vmul.f32 1.0, %v1312
        %v1314 = vrcp.pop %v1277
        %v1315 = vmul.f32 1.0, %v1314
        %v1316 = vrcp.pop %v1278
        %v1317 = vmul.f32 1.0, %v1316
        %v1318 = vrcp.pop %v1279
        %v1319 = vmul.f32 1.0, %v1318
        %v1320 = vrcp.pop %v1280
        %v1321 = vmul.f32 1.0, %v1320
        %v1322 = vrcp.pop %v1281
        %v1323 = vmul.f32 1.0, %v1322
        %v1324 = vrcp.pop %v1282
        %v1325 = vmul.f32 1.0, %v1324
        %v1326 = vrcp.pop %v1283
        %v1327 = vmul.f32 1.0, %v1326
        %v1328 = vrcp.pop %v1284
        %v1329 = vmul.f32 1.0, %v1328
        %v1330 = vrcp.pop %v1285
        %v1331 = vmul.f32 1.0, %v1330
        %v1332 = vrcp.pop %v1286
        %v1333 = vmul.f32 1.0, %v1332
        %v1334 = vrcp.pop %v1287
        %v1335 = vmul.f32 1.0, %v1334
        %v1336 = vrcp.pop %v1288
        %v1337 = vmul.f32 1.0, %v1336
        %v1338 = vrcp.pop %v1289
        %v1339 = vmul.f32 1.0, %v1338
        %v1340 = vrcp.pop %v1290
        %v1341 = vmul.f32 1.0, %v1340
        %v1342 = vrcp.pop %v1291
        %v1343 = vmul.f32 1.0, %v1342
        %v1344 = vrcp.pop %v1292
        %v1345 = vmul.f32 1.0, %v1344
        %v1346 = vrcp.pop %v1293
        %v1347 = vmul.f32 1.0, %v1346
        %v1348 = vrcp.pop %v1294
        %v1349 = vmul.f32 1.0, %v1348
        %v1350 = vrcp.pop %v1295
        %v1351 = vmul.f32 1.0, %v1350
        %v1352 = vrcp.pop %v1296
        %v1353 = vmul.f32 1.0, %v1352
        %v1354 = vrcp.pop %v1297
        %v1355 = vmul.f32 1.0, %v1354
        %v1356 = vrcp.pop %v1298
        %v1357 = vmul.f32 1.0, %v1356
        %v1358 = vrcp.pop %v1299
        %v1359 = vmul.f32 1.0, %v1358
        %v1360 = vrcp.pop %v1300
        %v1361 = vmul.f32 1.0, %v1360
        %v1362 = vrcp.pop %v1301
        %v1363 = vmul.f32 1.0, %v1362
        %v1364 = vrcp.pop %v1302
        %v1365 = vmul.f32 1.0, %v1364
        %v1366 = vrcp.pop %v1303
        %v1367 = vmul.f32 1.0, %v1366
        %v1368 = vmul.f32 %v1050, %v1305
        %v1369 = vmul.f32 %v1053, %v1307
        %v1370 = vmul.f32 %v1058, %v1309
        %v1371 = vmul.f32 %v1061, %v1311
        %v1372 = vmul.f32 %v1066, %v1313
        %v1373 = vmul.f32 %v1069, %v1315
        %v1374 = vmul.f32 %v1074, %v1317
        %v1375 = vmul.f32 %v1077, %v1319
        %v1376 = vmul.f32 %v1082, %v1321
        %v1377 = vmul.f32 %v1085, %v1323
        %v1378 = vmul.f32 %v1090, %v1325
        %v1379 = vmul.f32 %v1093, %v1327
        %v1380 = vmul.f32 %v1098, %v1329
        %v1381 = vmul.f32 %v1101, %v1331
        %v1382 = vmul.f32 %v1106, %v1333
        %v1383 = vmul.f32 %v1109, %v1335
        %v1384 = vmul.f32 %v1114, %v1337
        %v1385 = vmul.f32 %v1117, %v1339
        %v1386 = vmul.f32 %v1122, %v1341
        %v1387 = vmul.f32 %v1125, %v1343
        %v1388 = vmul.f32 %v1130, %v1345
        %v1389 = vmul.f32 %v1133, %v1347
        %v1390 = vmul.f32 %v1138, %v1349
        %v1391 = vmul.f32 %v1141, %v1351
        %v1392 = vmul.f32 %v1146, %v1353
        %v1393 = vmul.f32 %v1149, %v1355
        %v1394 = vmul.f32 %v1154, %v1357
        %v1395 = vmul.f32 %v1157, %v1359
        %v1396 = vmul.f32 %v1162, %v1361
        %v1397 = vmul.f32 %v1165, %v1363
        %v1398 = vmul.f32 %v1170, %v1365
        %v1399 = vmul.f32 %v1173, %v1367
        %v1400 = vld [vmem:[#allocation8] sm:$0xf]
        %v1401 = vld [vmem:[#allocation8 + $0x4] sm:$0xf]
        %v1402 = vld [vmem:[#allocation8 + $0x8] sm:$0xf]
        %v1403 = vld [vmem:[#allocation8 + $0xc] sm:$0xf]
        %v1404 = vld [vmem:[#allocation8 + $0x10] sm:$0xf]
        %v1405 = vld [vmem:[#allocation8 + $0x14] sm:$0xf]
        %v1406 = vld [vmem:[#allocation8 + $0x18] sm:$0xf]
        %v1407 = vld [vmem:[#allocation8 + $0x1c] sm:$0xf]
        %v1408 = vld [vmem:[#allocation8 + $0x20] sm:$0xf]
        %v1409 = vld [vmem:[#allocation8 + $0x24] sm:$0xf]
        %v1410 = vld [vmem:[#allocation8 + $0x28] sm:$0xf]
        %v1411 = vld [vmem:[#allocation8 + $0x2c] sm:$0xf]
        %v1412 = vld [vmem:[#allocation8 + $0x30] sm:$0xf]
        %v1413 = vld [vmem:[#allocation8 + $0x34] sm:$0xf]
        %v1414 = vld [vmem:[#allocation8 + $0x38] sm:$0xf]
        %v1415 = vld [vmem:[#allocation8 + $0x3c] sm:$0xf]
        %v1416 = vld [vmem:[%s6] sm:$0x1]
        %v1417 = vpack.c.bf16 %v1369, %v1368
        %v1418 = vpack.c.bf16 %v1371, %v1370
        %v1419 = vpack.c.bf16 %v1373, %v1372
        %v1420 = vpack.c.bf16 %v1375, %v1374
        %v1421 = vpack.c.bf16 %v1377, %v1376
        %v1422 = vpack.c.bf16 %v1379, %v1378
        %v1423 = vpack.c.bf16 %v1381, %v1380
        %v1424 = vpack.c.bf16 %v1383, %v1382
        %v1425 = vpack.c.bf16 %v1385, %v1384
        %v1426 = vpack.c.bf16 %v1387, %v1386
        %v1427 = vpack.c.bf16 %v1389, %v1388
        %v1428 = vpack.c.bf16 %v1391, %v1390
        %v1429 = vpack.c.bf16 %v1393, %v1392
        %v1430 = vpack.c.bf16 %v1395, %v1394
        %v1431 = vpack.c.bf16 %v1397, %v1396
        %v1432 = vpack.c.bf16 %v1399, %v1398
        %v1434 = vlaneseq
        %v1435 = vshrl.u32 %v1434, 7
        %v1436 = vsub.s32 0, %v1435
        %v1437 = vrot.slane %v1416, %v1436
        %v1455 = vunpack.c.l.b16 %v1400
        %v1456 = vunpack.c.l.b16 %v1401
        %v1457 = vunpack.c.l.b16 %v1402
        %v1458 = vunpack.c.l.b16 %v1403
        %v1459 = vunpack.c.l.b16 %v1404
        %v1460 = vunpack.c.l.b16 %v1405
        %v1461 = vunpack.c.l.b16 %v1406
        %v1462 = vunpack.c.l.b16 %v1407
        %v1463 = vunpack.c.l.b16 %v1408
        %v1464 = vunpack.c.l.b16 %v1409
        %v1465 = vunpack.c.l.b16 %v1410
        %v1466 = vunpack.c.l.b16 %v1411
        %v1467 = vunpack.c.l.b16 %v1412
        %v1468 = vunpack.c.l.b16 %v1413
        %v1469 = vunpack.c.l.b16 %v1414
        %v1470 = vunpack.c.l.b16 %v1415
        %v1471 = vpack.c.b16 %v1456, %v1455
        %v1472 = vpack.c.b16 %v1458, %v1457
        %v1473 = vpack.c.b16 %v1460, %v1459
        %v1474 = vpack.c.b16 %v1462, %v1461
        %v1475 = vpack.c.b16 %v1464, %v1463
        %v1476 = vpack.c.b16 %v1466, %v1465
        %v1477 = vpack.c.b16 %v1468, %v1467
        %v1478 = vpack.c.b16 %v1470, %v1469
        %1487 = vmatprep.subr.bf16.mxu0 0
        %1488 = vmatpush1.bf16.msra.mxu0 %v1478
        %1489 = vmatprep.subr.bf16.mxu0 0
        %1490 = vmatpush1.bf16.msra.mxu0 %v1477
        %1491 = vmatprep.subr.bf16.mxu0 0
        %1492 = vmatpush1.bf16.msra.mxu0 %v1476
        %1493 = vmatprep.subr.bf16.mxu0 0
        %1494 = vmatpush1.bf16.msra.mxu0 %v1475
        %1495 = vmatprep.subr.bf16.mxu0 0
        %1496 = vmatpush1.bf16.msra.mxu0 %v1474
        %1497 = vmatprep.subr.bf16.mxu0 0
        %1498 = vmatpush1.bf16.msra.mxu0 %v1473
        %1499 = vmatprep.subr.bf16.mxu0 0
        %1500 = vmatpush1.bf16.msra.mxu0 %v1472
        %1501 = vmatprep.subr.bf16.mxu0 0
        %1502 = vmatpush1.bf16.msra.mxu0 %v1471
        %1503 = vmatprep.subr.bf16.mxu0 0
        %1504 = vmatpush2.bf16.msra.mxu0 0
        %1505 = vmatprep.subr.bf16.mxu0 0
        %1506 = vmatpush2.bf16.msra.mxu0 0
        %1507 = vmatprep.subr.bf16.mxu0 0
        %1508 = vmatpush2.bf16.msra.mxu0 0
        %1509 = vmatprep.subr.bf16.mxu0 0
        %1510 = vmatpush2.bf16.msra.mxu0 0
        %1511 = vmatprep.subr.bf16.mxu0 0
        %1512 = vmatpush2.bf16.msra.mxu0 0
        %1513 = vmatprep.subr.bf16.mxu0 0
        %1514 = vmatpush2.bf16.msra.mxu0 0
        %1515 = vmatprep.subr.bf16.mxu0 0
        %1516 = vmatpush2.bf16.msra.mxu0 0
        %1517 = vmatprep.subr.bf16.mxu0 0
        %1518 = vmatpush2.bf16.msra.mxu0 0
        %1519 = vmatprep.mubr.bf16.mxu0 0
        %1520 = vmatmul.mubr.bf16.gmra.mxu0 %v1417
        %v1521 = vpop.f32.mrf.mxu0
        %v1522 = vadd.f32 %v1437, %v1521
        %v1523 = vpop.f32.mrf.mxu0
        %v1524 = vpop.f32.mrf.mxu0
        %v1525 = vadd.f32 %v1437, %v1524
        %v1526 = vpop.f32.mrf.mxu0
        %1527 = vmatprep.mubr.bf16.mxu0 0
        %1528 = vmatmul.mubr.bf16.gmra.mxu0 %v1418
        %v1529 = vpop.f32.mrf.mxu0
        %v1530 = vadd.f32 %v1437, %v1529
        %v1531 = vpop.f32.mrf.mxu0
        %v1532 = vpop.f32.mrf.mxu0
        %v1533 = vadd.f32 %v1437, %v1532
        %v1534 = vpop.f32.mrf.mxu0
        %1535 = vmatprep.mubr.bf16.mxu0 0
        %1536 = vmatmul.mubr.bf16.gmra.mxu0 %v1419
        %v1537 = vpop.f32.mrf.mxu0
        %v1538 = vadd.f32 %v1437, %v1537
        %v1539 = vpop.f32.mrf.mxu0
        %v1540 = vpop.f32.mrf.mxu0
        %v1541 = vadd.f32 %v1437, %v1540
        %v1542 = vpop.f32.mrf.mxu0
        %1543 = vmatprep.mubr.bf16.mxu0 0
        %1544 = vmatmul.mubr.bf16.gmra.mxu0 %v1420
        %v1545 = vpop.f32.mrf.mxu0
        %v1546 = vadd.f32 %v1437, %v1545
        %v1547 = vpop.f32.mrf.mxu0
        %v1548 = vpop.f32.mrf.mxu0
        %v1549 = vadd.f32 %v1437, %v1548
        %v1550 = vpop.f32.mrf.mxu0
        %1551 = vmatprep.mubr.bf16.mxu0 0
        %1552 = vmatmul.mubr.bf16.gmra.mxu0 %v1421
        %v1553 = vpop.f32.mrf.mxu0
        %v1554 = vadd.f32 %v1437, %v1553
        %v1555 = vpop.f32.mrf.mxu0
        %v1556 = vpop.f32.mrf.mxu0
        %v1557 = vadd.f32 %v1437, %v1556
        %v1558 = vpop.f32.mrf.mxu0
        %1559 = vmatprep.mubr.bf16.mxu0 0
        %1560 = vmatmul.mubr.bf16.gmra.mxu0 %v1422
        %v1561 = vpop.f32.mrf.mxu0
        %v1562 = vadd.f32 %v1437, %v1561
        %v1563 = vpop.f32.mrf.mxu0
        %v1564 = vpop.f32.mrf.mxu0
        %v1565 = vadd.f32 %v1437, %v1564
        %v1566 = vpop.f32.mrf.mxu0
        %1567 = vmatprep.mubr.bf16.mxu0 0
        %1568 = vmatmul.mubr.bf16.gmra.mxu0 %v1423
        %v1569 = vpop.f32.mrf.mxu0
        %v1570 = vadd.f32 %v1437, %v1569
        %v1571 = vpop.f32.mrf.mxu0
        %v1572 = vpop.f32.mrf.mxu0
        %v1573 = vadd.f32 %v1437, %v1572
        %v1574 = vpop.f32.mrf.mxu0
        %1575 = vmatprep.mubr.bf16.mxu0 0
        %1576 = vmatmul.mubr.bf16.gmra.mxu0 %v1424
        %v1577 = vpop.f32.mrf.mxu0
        %v1578 = vadd.f32 %v1437, %v1577
        %v1579 = vpop.f32.mrf.mxu0
        %v1580 = vpop.f32.mrf.mxu0
        %v1581 = vadd.f32 %v1437, %v1580
        %v1582 = vpop.f32.mrf.mxu0
        %1583 = vmatprep.mubr.bf16.mxu0 0
        %1584 = vmatmul.mubr.bf16.gmra.mxu0 %v1425
        %v1585 = vpop.f32.mrf.mxu0
        %v1586 = vadd.f32 %v1437, %v1585
        %v1587 = vpop.f32.mrf.mxu0
        %v1588 = vpop.f32.mrf.mxu0
        %v1589 = vadd.f32 %v1437, %v1588
        %v1590 = vpop.f32.mrf.mxu0
        %1591 = vmatprep.mubr.bf16.mxu0 0
        %1592 = vmatmul.mubr.bf16.gmra.mxu0 %v1426
        %v1593 = vpop.f32.mrf.mxu0
        %v1594 = vadd.f32 %v1437, %v1593
        %v1595 = vpop.f32.mrf.mxu0
        %v1596 = vpop.f32.mrf.mxu0
        %v1597 = vadd.f32 %v1437, %v1596
        %v1598 = vpop.f32.mrf.mxu0
        %1599 = vmatprep.mubr.bf16.mxu0 0
        %1600 = vmatmul.mubr.bf16.gmra.mxu0 %v1427
        %v1601 = vpop.f32.mrf.mxu0
        %v1602 = vadd.f32 %v1437, %v1601
        %v1603 = vpop.f32.mrf.mxu0
        %v1604 = vpop.f32.mrf.mxu0
        %v1605 = vadd.f32 %v1437, %v1604
        %v1606 = vpop.f32.mrf.mxu0
        %1607 = vmatprep.mubr.bf16.mxu0 0
        %1608 = vmatmul.mubr.bf16.gmra.mxu0 %v1428
        %v1609 = vpop.f32.mrf.mxu0
        %v1610 = vadd.f32 %v1437, %v1609
        %v1611 = vpop.f32.mrf.mxu0
        %v1612 = vpop.f32.mrf.mxu0
        %v1613 = vadd.f32 %v1437, %v1612
        %v1614 = vpop.f32.mrf.mxu0
        %1615 = vmatprep.mubr.bf16.mxu0 0
        %1616 = vmatmul.mubr.bf16.gmra.mxu0 %v1429
        %v1617 = vpop.f32.mrf.mxu0
        %v1618 = vadd.f32 %v1437, %v1617
        %v1619 = vpop.f32.mrf.mxu0
        %v1620 = vpop.f32.mrf.mxu0
        %v1621 = vadd.f32 %v1437, %v1620
        %v1622 = vpop.f32.mrf.mxu0
        %1623 = vmatprep.mubr.bf16.mxu0 0
        %1624 = vmatmul.mubr.bf16.gmra.mxu0 %v1430
        %v1625 = vpop.f32.mrf.mxu0
        %v1626 = vadd.f32 %v1437, %v1625
        %v1627 = vpop.f32.mrf.mxu0
        %v1628 = vpop.f32.mrf.mxu0
        %v1629 = vadd.f32 %v1437, %v1628
        %v1630 = vpop.f32.mrf.mxu0
        %1631 = vmatprep.mubr.bf16.mxu0 0
        %1632 = vmatmul.mubr.bf16.gmra.mxu0 %v1431
        %v1633 = vpop.f32.mrf.mxu0
        %v1634 = vadd.f32 %v1437, %v1633
        %v1635 = vpop.f32.mrf.mxu0
        %v1636 = vpop.f32.mrf.mxu0
        %v1637 = vadd.f32 %v1437, %v1636
        %v1638 = vpop.f32.mrf.mxu0
        %1639 = vmatprep.mubr.bf16.mxu0 0
        %1640 = vmatmul.mubr.bf16.gmra.mxu0 %v1432
        %v1641 = vpop.f32.mrf.mxu0
        %v1642 = vadd.f32 %v1437, %v1641
        %v1643 = vpop.f32.mrf.mxu0
        %v1644 = vpop.f32.mrf.mxu0
        %v1645 = vadd.f32 %v1437, %v1644
        %v1646 = vpop.f32.mrf.mxu0
        %1647 = vdwg.mxu0
        %1648 = vst [vmem:[%s340] sm:$0xff] %v1522
        %1649 = vst [vmem:[%s340 + $0x8] sm:$0xff] %v1525
        %1650 = vst [vmem:[%s340 + $0x10] sm:$0xff] %v1530
        %1651 = vst [vmem:[%s340 + $0x18] sm:$0xff] %v1533
        %1652 = vst [vmem:[%s340 + $0x20] sm:$0xff] %v1538
        %1653 = vst [vmem:[%s340 + $0x28] sm:$0xff] %v1541
        %1654 = vst [vmem:[%s340 + $0x30] sm:$0xff] %v1546
        %1655 = vst [vmem:[%s340 + $0x38] sm:$0xff] %v1549
        %1656 = vst [vmem:[%s340 + $0x40] sm:$0xff] %v1554
        %1657 = vst [vmem:[%s340 + $0x48] sm:$0xff] %v1557
        %1658 = vst [vmem:[%s340 + $0x50] sm:$0xff] %v1562
        %1659 = vst [vmem:[%s340 + $0x58] sm:$0xff] %v1565
        %1660 = vst [vmem:[%s340 + $0x60] sm:$0xff] %v1570
        %1661 = vst [vmem:[%s340 + $0x68] sm:$0xff] %v1573
        %1662 = vst [vmem:[%s340 + $0x70] sm:$0xff] %v1578
        %1663 = vst [vmem:[%s340 + $0x78] sm:$0xff] %v1581
        %1664 = vst [vmem:[%s340 + $0x80] sm:$0xff] %v1586
        %1665 = vst [vmem:[%s340 + $0x88] sm:$0xff] %v1589
        %1666 = vst [vmem:[%s340 + $0x90] sm:$0xff] %v1594
        %1667 = vst [vmem:[%s340 + $0x98] sm:$0xff] %v1597
        %1668 = vst [vmem:[%s340 + $0xa0] sm:$0xff] %v1602
        %1669 = vst [vmem:[%s340 + $0xa8] sm:$0xff] %v1605
        %1670 = vst [vmem:[%s340 + $0xb0] sm:$0xff] %v1610
        %1671 = vst [vmem:[%s340 + $0xb8] sm:$0xff] %v1613
        %1672 = vst [vmem:[%s340 + $0xc0] sm:$0xff] %v1618
        %1673 = vst [vmem:[%s340 + $0xc8] sm:$0xff] %v1621
        %1674 = vst [vmem:[%s340 + $0xd0] sm:$0xff] %v1626
        %1675 = vst [vmem:[%s340 + $0xd8] sm:$0xff] %v1629
        %1676 = vst [vmem:[%s340 + $0xe0] sm:$0xff] %v1634
        %1677 = vst [vmem:[%s340 + $0xe8] sm:$0xff] %v1637
        %1678 = vst [vmem:[%s340 + $0xf0] sm:$0xff] %v1642
        %1679 = vst [vmem:[%s340 + $0xf8] sm:$0xff] %v1645
        %s1680 = sand.u32 %s186, 1
        %s1681 = scalar_lea.sflag [#allocation4], %s1680
        %s1682 = sand.u32 %s186, 1
        %s1683 = smul.addr %s1682, 256
        %s1684 = scalar_lea.vmem [#allocation10], %s1683
        // Predicated region
        $region65: #{tpu_custom_call.1} parent=47 // pred_check
          %p1685 = pneg %p196
        $region66: #{tpu_custom_call.1} parent=47 // pred_check_branch
          %1687 = sbr.rel (%p1685) target = $region68
        $region67: #{tpu_custom_call.1} parent=47 // pred_region
          %s1688 = smul.u32 32, %s26
          %s1690 = ssub.s32 4096, 4096
          %1691 = vsyncadd %s1681, %s1690
          %s1692 = smul.addr %s1688, 128
          %s1693 = scalar_lea.hbm %s7, %s1692
          %s1694 = sshll.u32 %s1684, 4
          %s1695 = int_to_ptr.vmem [resolvable:$true] %s1694
          %1700 = dma.vmem_to_hbm [thread:$0]  %s1695, 4096, %s1693, %s1681, 128, 128, 8
        $region68: #{tpu_custom_call.1} parent=47 // pred_fallthru
          _
      $region48: #{tpu_custom_call.1} parent=5 // pred_fallthru
        _
      %p1701 = scmp.le.s32.totalorder 2, %s21
      // Predicated region
      $region69: #{tpu_custom_call.1} parent=5 // pred_check
        %p1702 = pneg %p1701
      $region70: #{tpu_custom_call.1} parent=5 // pred_check_branch
        %1704 = sbr.rel (%p1702) target = $region72
      $region71: #{tpu_custom_call.1} parent=5 // pred_region
        %s1705 = ssub.s32 %s21, 2
        // Predicated region
        $region73: #{tpu_custom_call.1} parent=71 // pred_check
          %p1706 = pneg %p202
        $region74: #{tpu_custom_call.1} parent=71 // pred_check_branch
          %1708 = sbr.rel (%p1706) target = $region76
        $region75: #{tpu_custom_call.1} parent=71 // pred_region
          %s1709 = sand.u32 %s187, 1
          %s1710 = scalar_lea.sflag [#allocation4], %s1709
          %s1711 = sand.u32 %s187, 1
          %s1712 = smul.addr %s1711, 256
          %s1713 = scalar_lea.vmem [#allocation10], %s1712
          %1714 = dma.done %s1710, 4096
        $region76: #{tpu_custom_call.1} parent=71 // pred_fallthru
          _
      $region72: #{tpu_custom_call.1} parent=5 // pred_fallthru
        _
    $region6: #{tpu_custom_call.1} parent=1 // loop_footer
      %s25 = sadd.s32 1, %s21
    $region7: #{tpu_custom_call.1} parent=1 // loop_footer_branch
      %20 = sbr.rel target = $region3
    $region8: #{tpu_custom_call.1} parent=1 // loop_exit
      _
    %1715 = vsyncpa [#allocation3], 1
    %s1716 = scalar_lea.sflag [#allocation3], 1
    %1717 = vsyncpa %s1716, 1
    %1718 = vsyncpa [#allocation6], 1
    %1719 = vsyncpa [#allocation9], 1
    %1720 = vsyncpa [#allocation4], 1
    %s1721 = scalar_lea.sflag [#allocation4], 1
    %1722 = vsyncpa %s1721, 1

</llo_original>
